<compile_context>
chip_gen: v7x
topology: tpu7x:2x2x1
jax: 0.10.0
libtpu: 0.0.40
codegen_flags: <defaults>
</compile_context>

<pallas_src>
import jax
import jax.numpy as jnp
from jax.experimental import pallas as pl
from jax.experimental.pallas import tpu as pltpu

EPS = 1e-5


def _conv_pool_topology(L):
    """Positions that survive both max-pools and feed fc1 (fc1 expects exactly
    64 flattened features -> a single pool2 position)."""
    n_c2 = 2 * (((L - 2) // 2 - 2) // 2)   # conv2 positions pool2 consumes (=2)
    n_p1 = n_c2 + 2                        # pool1 positions those windows need (=4)
    n_h1 = 2 * n_p1                        # conv1 positions those pools need (=8)
    return n_h1, n_p1, n_c2


def _padded_len(L):
    # Pad the conv1 contraction axis to a sublane multiple (extra rows/cols are
    # zero, so the matmul result is unchanged).
    return ((L + 7) // 8) * 8


def cnn_kernel(x_ref, a_ref,
               w1s_ref, nb1_ref, s1_ref, t1_ref,
               w2b_ref, nb2_ref, s2_ref, t2_ref,
               wf1_ref, nbf1_ref, s3_ref, t3_ref,
               wf2x_ref, wf2a_ref, bf2_ref,
               out_ref):
    # ---- conv1 as one im2col matmul (f32 operands, f32 acc on MXU) ----
    # w1s rows are ordered [even conv positions | odd conv positions] x 32 ch.
    z1 = jnp.dot(w1s_ref[...], x_ref[...],
                 preferred_element_type=jnp.float32)              # (256, TB)
    # relu(z+b)*s+t == max(z,-b)*s + (b*s+t): bias folded into the threshold.
    h1 = jnp.maximum(z1, nb1_ref[...]) * s1_ref[...] + t1_ref[...]
    half1 = h1.shape[0] // 2
    # maxpool1 + bf16 cast fused; result is already in conv2 block-input order
    # (pool positions 0..3, 32 channels each).
    p1 = jnp.maximum(h1[:half1], h1[half1:]).astype(jnp.bfloat16)  # (128, TB)

    # ---- conv2: both output positions fused into one (128,128)x(128,TB) dot ----
    z2 = jnp.dot(w2b_ref[...], p1, preferred_element_type=jnp.float32)  # (128, TB)
    h2 = jnp.maximum(z2, nb2_ref[...]) * s2_ref[...] + t2_ref[...]
    half2 = h2.shape[0] // 2
    # maxpool2 over the two 64-row halves; flatten is identity on (64, TB).
    q = jnp.maximum(h2[:half2], h2[half2:]).astype(jnp.bfloat16)   # (64, TB)

    # ---- fc1 + ReLU + BN3 (bias folded into the threshold) ----
    z3 = jnp.dot(wf1_ref[...], q, preferred_element_type=jnp.float32)   # (H, TB)
    h3 = (jnp.maximum(z3, nbf1_ref[...]) * s3_ref[...]
          + t3_ref[...]).astype(jnp.bfloat16)

    # ---- concat([h3, a]) @ fc2_w.T as a split matmul; lane-dense (5, TB) store ----
    out_ref[...] = (jnp.dot(wf2x_ref[...], h3, preferred_element_type=jnp.float32)
                    + wf2a_ref[...] * a_ref[...]
                    + bf2_ref[...])


def bn_scale_shift(gamma, beta, mean, var):
    s = gamma / jnp.sqrt(var + EPS)
    return s, beta - mean * s


def prepare_params(p, input_size):
    """One-time parameter preparation (keep OUT of the per-step forward path):
    builds the conv1 im2col weight and conv2 block weight, folds BN running
    stats + biases into per-row scale/threshold/shift vectors, and casts the
    MXU weights (except conv1's tiny f32 im2col weight) to bf16."""
    L = input_size
    if (((L - 2) // 2 - 2) // 2) != 1:
        raise ValueError(
            f"input_size={L} is incompatible with fc1(64, ...): the conv/pool "
            "chain must flatten to exactly 64 features (input_size must be 12).")
    n_h1, n_p1, n_c2 = _conv_pool_topology(L)       # 8, 4, 2
    Lp = _padded_len(L)
    H = p['fc1_w'].shape[0]

    s1, t1 = bn_scale_shift(p['g1'], p['be1'], p['m1'], p['v1'])
    s2, t2 = bn_scale_shift(p['g2'], p['be2'], p['m2'], p['v2'])
    s3, t3 = bn_scale_shift(p['g3'], p['be3'], p['m3'], p['v3'])
    col = lambda v: v.reshape(-1, 1).astype(jnp.float32)
    tile_col = lambda v, r: jnp.tile(col(v), (r, 1))

    # conv1 im2col weight, rows ordered [even positions | odd positions] so the
    # kernel's pool1 is a contiguous-slice max. W1s[blk*32+c, pos+k] = w1[c,0,k].
    w1k = p['w1'][:, 0, :].astype(jnp.float32)                   # (32, 3)
    c1 = w1k.shape[0]
    order = list(range(0, n_h1, 2)) + list(range(1, n_h1, 2))
    w1s = jnp.zeros((n_h1 * c1, Lp), jnp.float32)
    for blk, pos in enumerate(order):
        w1s = w1s.at[blk * c1:(blk + 1) * c1, pos:pos + 3].set(w1k)

    # conv2 block weight: rows [0:64] = output position 0 over pool positions
    # 0..2, rows [64:128] = output position 1 over pool positions 1..3.
    c2, _, k2 = p['w2'].shape                                    # (64, 32, 3)
    w2s = jnp.transpose(p['w2'], (0, 2, 1)).reshape(c2, k2 * c1)  # (64,96), [k*32+c]
    w2b = jnp.zeros((n_c2 * c2, n_p1 * c1), jnp.float32)          # (128, 128)
    w2b = w2b.at[:c2, :k2 * c1].set(w2s)
    w2b = w2b.at[c2:, c1:(k2 + 1) * c1].set(w2s)

    return (
        w1s,                                                      # (256, Lp) f32
        tile_col(-p['b1'], n_h1),                                 # -bias (ReLU thr)
        tile_col(s1, n_h1),
        tile_col(p['b1'] * s1 + t1, n_h1),                        # folded shift
        w2b.astype(jnp.bfloat16),                                 # (128, 128) bf16
        tile_col(-p['b2'], n_c2),
        tile_col(s2, n_c2),
        tile_col(p['b2'] * s2 + t2, n_c2),
        p['fc1_w'].astype(jnp.bfloat16),                          # (H, 64) bf16
        col(-p['fc1_b']),
        col(s3),
        col(p['fc1_b'] * s3 + t3),
        p['fc2_w'][:, :H].astype(jnp.bfloat16),                   # (5, H) bf16
        col(p['fc2_w'][:, H:]),                                   # (5, 1) aux col f32
        col(p['fc2_b']),
    )


def cnn_forward(x3, a3, prepared, *, tb=2048, vmem_limit_bytes=None):
    """x3: (B, L, 1) f32, a3: (B, 1, 1) f32. Returns (B, 5) f32."""
    B, L, _ = x3.shape
    if (((L - 2) // 2 - 2) // 2) != 1:
        raise ValueError(
            f"input_size={L} is incompatible with fc1(64, ...): the conv/pool "
            "chain must flatten to exactly 64 features (input_size must be 12).")
    Lp = _padded_len(L)
    assert prepared[0].shape[1] == Lp, "prepared params built for a different input_size"

    # Batch goes on the 128-lane axis.  tb=2048 keeps per-tile VMEM at ~6-8 MiB
    # (inside every generation's scoped default, incl. v7x's smaller VMEM)
    # while amortizing the ~0.35us per-grid-step overhead.  On v6e/v5e push tb
    # to 4096-8192 and pass vmem_limit_bytes above the scoped default.
    tb = max(128, min(tb, pl.cdiv(B, 128) * 128))
    padded = pl.cdiv(B, tb) * tb

    # Single fused transpose+pad (no zeros-buffer scatter).  Padded lanes/rows
    # are zero and every kernel op is per-lane, so they are simply sliced off.
    xt = jnp.pad(jnp.transpose(x3[:, :, 0]), ((0, Lp - L), (0, padded - B)))
    at = jnp.pad(a3[:, 0, 0][None, :], ((0, 0), (0, padded - B)))

    vmem = pl.BlockSpec(memory_space=pltpu.MemorySpace.VMEM)   # weights: resident, untiled
    cp = dict(dimension_semantics=("parallel",))               # grid steps shard over v7x's 2 TCs
    if vmem_limit_bytes is not None:
        cp["vmem_limit_bytes"] = vmem_limit_bytes
    out = pl.pallas_call(
        cnn_kernel,
        out_shape=jax.ShapeDtypeStruct((5, padded), jnp.float32),
        grid=(padded // tb,),
        in_specs=[pl.BlockSpec((Lp, tb), lambda i: (0, i)),    # x tile, pipelined
                  pl.BlockSpec((1, tb), lambda i: (0, i))]     # aux tile, pipelined
                 + [vmem] * len(prepared),
        out_specs=pl.BlockSpec((5, tb), lambda i: (0, i)),     # lane-dense output tile
        compiler_params=pltpu.CompilerParams(**cp),
    )(xt, at, *prepared)
    return jnp.transpose(out[:, :B])                           # (B, 5)


def reference_forward(x3, a3, p):
    """Pure-JAX reference with PyTorch NCL conventions (inference mode)."""
    x = jnp.transpose(x3, (0, 2, 1))                 # (B, 1, L)

    def conv1d(x, w, b):
        y = jax.lax.conv_general_dilated(x, w, (1,), 'VALID',
                                         dimension_numbers=('NCH', 'OIH', 'NCH'))
        return y + b[None, :, None]

    def bn(x, g, be, m, v):
        s = g / jnp.sqrt(v + EPS)
        return x * s[None, :, None] + (be - m * s)[None, :, None]

    def pool(x):
        return jax.lax.reduce_window(x, -jnp.inf, jax.lax.max,
                                     (1, 1, 2), (1, 1, 2), 'VALID')

    h = jnp.maximum(conv1d(x, p['w1'], p['b1']), 0.0)
    h = pool(bn(h, p['g1'], p['be1'], p['m1'], p['v1']))
    h = jnp.maximum(conv1d(h, p['w2'], p['b2']), 0.0)
    h = pool(bn(h, p['g2'], p['be2'], p['m2'], p['v2']))
    h = h.reshape(h.shape[0], -1)                    # (B, 64)
    h = jnp.maximum(h @ p['fc1_w'].T + p['fc1_b'], 0.0)
    s3 = p['g3'] / jnp.sqrt(p['v3'] + EPS)
    h = h * s3 + (p['be3'] - p['m3'] * s3)
    h = jnp.concatenate([h, a3[..., 0]], axis=1)     # (B, H+1)
    return h @ p['fc2_w'].T + p['fc2_b']


def init_params(key, hidden_size):
    ks = jax.random.split(key, 20)
    f32 = jnp.float32

    def rn(k, shape, scale=0.1):
        return scale * jax.random.normal(k, shape, dtype=f32)

    p = {
        'w1': rn(ks[0], (32, 1, 3)),   'b1': rn(ks[1], (32,)),
        'g1': jax.random.uniform(ks[2], (32,), f32, 0.5, 1.5),
        'be1': rn(ks[3], (32,)), 'm1': rn(ks[4], (32,)),
        'v1': jax.random.uniform(ks[5], (32,), f32, 0.5, 1.5),

        'w2': rn(ks[6], (64, 32, 3)),  'b2': rn(ks[7], (64,)),
        'g2': jax.random.uniform(ks[8], (64,), f32, 0.5, 1.5),
        'be2': rn(ks[9], (64,)), 'm2': rn(ks[10], (64,)),
        'v2': jax.random.uniform(ks[11], (64,), f32, 0.5, 1.5),

        'fc1_w': rn(ks[12], (hidden_size, 64)), 'fc1_b': rn(ks[13], (hidden_size,)),
        'g3': jax.random.uniform(ks[14], (hidden_size,), f32, 0.5, 1.5),
        'be3': rn(ks[15], (hidden_size,)), 'm3': rn(ks[16], (hidden_size,)),
        'v3': jax.random.uniform(ks[17], (hidden_size,), f32, 0.5, 1.5),

        'fc2_w': rn(ks[18], (5, hidden_size + 1)), 'fc2_b': rn(ks[19], (5,)),
    }
    return p


if __name__ == "__main__":
    B, L, H = 2, 12, 32        # input_size=12 => conv/pool chain flattens to 64 features
    key = jax.random.PRNGKey(0)
    kx, ka, kp = jax.random.split(key, 3)

    x3 = jax.random.normal(kx, (B, L, 1), dtype=jnp.float32)   # PyTorch x: (B, L, 1)
    a3 = jax.random.normal(ka, (B, 1, 1), dtype=jnp.float32)   # PyTorch a: (B, 1, 1)
    params = init_params(kp, H)
    prepared = prepare_params(params, L)   # one-time prep, outside the forward path

    out = cnn_forward(x3, a3, prepared)
    out = jax.block_until_ready(out)

    ref = reference_forward(x3, a3, params)
    assert out.shape == (B, 5)
    # Tolerance reflects bf16 MXU operands (f32 accumulation) in the kernel.
    assert jnp.allclose(out, ref, atol=2e-2, rtol=2e-2), (out, ref)
    print("KERNEL_OK")
</pallas_src>

<mosaic_0001>
module attributes {stable_mosaic.version = 11 : i64} {
  func.func @cnn_kernel(%arg0: i32, %arg1: memref<16x128xf32, #tpu.memory_space<vmem>>, %arg2: memref<1x128xf32, #tpu.memory_space<vmem>>, %arg3: memref<256x16xf32, #tpu.memory_space<vmem>>, %arg4: memref<256x1xf32, #tpu.memory_space<vmem>>, %arg5: memref<256x1xf32, #tpu.memory_space<vmem>>, %arg6: memref<256x1xf32, #tpu.memory_space<vmem>>, %arg7: memref<128x128xbf16, #tpu.memory_space<vmem>>, %arg8: memref<128x1xf32, #tpu.memory_space<vmem>>, %arg9: memref<128x1xf32, #tpu.memory_space<vmem>>, %arg10: memref<128x1xf32, #tpu.memory_space<vmem>>, %arg11: memref<32x64xbf16, #tpu.memory_space<vmem>>, %arg12: memref<32x1xf32, #tpu.memory_space<vmem>>, %arg13: memref<32x1xf32, #tpu.memory_space<vmem>>, %arg14: memref<32x1xf32, #tpu.memory_space<vmem>>, %arg15: memref<5x32xbf16, #tpu.memory_space<vmem>>, %arg16: memref<5x1xf32, #tpu.memory_space<vmem>>, %arg17: memref<5x1xf32, #tpu.memory_space<vmem>>, %arg18: memref<5x128xf32, #tpu.memory_space<vmem>>) attributes {dimension_semantics = [#tpu.dimension_semantics<parallel>], iteration_bounds = array<i64: 1>, scalar_prefetch = 0 : i64, scratch_operands = 0 : i64, tpu.core_type = #tpu.core_type<tc>, window_params = [{transform_indices = @transform_0, window_bounds = array<i64: 16, 128>}, {transform_indices = @transform_1, window_bounds = array<i64: 1, 128>}, {pipeline_mode = #tpu.pipeline_mode<synchronous>, transform_indices = @transform_2, window_bounds = array<i64: 256, 16>}, {pipeline_mode = #tpu.pipeline_mode<synchronous>, transform_indices = @transform_3, window_bounds = array<i64: 256, 1>}, {pipeline_mode = #tpu.pipeline_mode<synchronous>, transform_indices = @transform_4, window_bounds = array<i64: 256, 1>}, {pipeline_mode = #tpu.pipeline_mode<synchronous>, transform_indices = @transform_5, window_bounds = array<i64: 256, 1>}, {pipeline_mode = #tpu.pipeline_mode<synchronous>, transform_indices = @transform_6, window_bounds = array<i64: 128, 128>}, {pipeline_mode = #tpu.pipeline_mode<synchronous>, transform_indices = @transform_7, window_bounds = array<i64: 128, 1>}, {pipeline_mode = #tpu.pipeline_mode<synchronous>, transform_indices = @transform_8, window_bounds = array<i64: 128, 1>}, {pipeline_mode = #tpu.pipeline_mode<synchronous>, transform_indices = @transform_9, window_bounds = array<i64: 128, 1>}, {pipeline_mode = #tpu.pipeline_mode<synchronous>, transform_indices = @transform_10, window_bounds = array<i64: 32, 64>}, {pipeline_mode = #tpu.pipeline_mode<synchronous>, transform_indices = @transform_11, window_bounds = array<i64: 32, 1>}, {pipeline_mode = #tpu.pipeline_mode<synchronous>, transform_indices = @transform_12, window_bounds = array<i64: 32, 1>}, {pipeline_mode = #tpu.pipeline_mode<synchronous>, transform_indices = @transform_13, window_bounds = array<i64: 32, 1>}, {pipeline_mode = #tpu.pipeline_mode<synchronous>, transform_indices = @transform_14, window_bounds = array<i64: 5, 32>}, {pipeline_mode = #tpu.pipeline_mode<synchronous>, transform_indices = @transform_15, window_bounds = array<i64: 5, 1>}, {pipeline_mode = #tpu.pipeline_mode<synchronous>, transform_indices = @transform_16, window_bounds = array<i64: 5, 1>}, {transform_indices = @transform_17, window_bounds = array<i64: 5, 128>}]} {
    %c0 = arith.constant 0 : index
    %c0_0 = arith.constant 0 : index
    %0 = vector.load %arg3[%c0, %c0_0] : memref<256x16xf32, #tpu.memory_space<vmem>>, vector<256x16xf32>
    %c0_1 = arith.constant 0 : index
    %c0_2 = arith.constant 0 : index
    %1 = vector.load %arg1[%c0_1, %c0_2] : memref<16x128xf32, #tpu.memory_space<vmem>>, vector<16x128xf32>
    %cst = arith.constant dense<0.000000e+00> : vector<256x128xf32>
    %2 = tpu.matmul %0, %1, %cst {dimension_numbers = #tpu.dot_dimension_numbers<[1], [0], [0], [1], [0, 0, 1, 1], [], []>} : vector<256x16xf32>, vector<16x128xf32>, vector<256x128xf32> -> vector<256x128xf32>
    %c0_3 = arith.constant 0 : index
    %c0_4 = arith.constant 0 : index
    %3 = vector.load %arg4[%c0_3, %c0_4] : memref<256x1xf32, #tpu.memory_space<vmem>>, vector<256x1xf32>
    %4 = vector.broadcast %3 : vector<256x1xf32> to vector<256x128xf32>
    %5 = arith.maximumf %2, %4 : vector<256x128xf32>
    %c0_5 = arith.constant 0 : index
    %c0_6 = arith.constant 0 : index
    %6 = vector.load %arg5[%c0_5, %c0_6] : memref<256x1xf32, #tpu.memory_space<vmem>>, vector<256x1xf32>
    %7 = vector.broadcast %6 : vector<256x1xf32> to vector<256x128xf32>
    %8 = arith.mulf %5, %7 : vector<256x128xf32>
    %c0_7 = arith.constant 0 : index
    %c0_8 = arith.constant 0 : index
    %9 = vector.load %arg6[%c0_7, %c0_8] : memref<256x1xf32, #tpu.memory_space<vmem>>, vector<256x1xf32>
    %10 = vector.broadcast %9 : vector<256x1xf32> to vector<256x128xf32>
    %11 = arith.addf %8, %10 : vector<256x128xf32>
    %12 = vector.extract_strided_slice %11 {offsets = [0, 0], sizes = [128, 128], strides = [1, 1]} : vector<256x128xf32> to vector<128x128xf32>
    %13 = vector.extract_strided_slice %11 {offsets = [128, 0], sizes = [128, 128], strides = [1, 1]} : vector<256x128xf32> to vector<128x128xf32>
    %14 = arith.maximumf %12, %13 : vector<128x128xf32>
    %15 = arith.truncf %14 : vector<128x128xf32> to vector<128x128xbf16>
    %c0_9 = arith.constant 0 : index
    %c0_10 = arith.constant 0 : index
    %16 = vector.load %arg7[%c0_9, %c0_10] : memref<128x128xbf16, #tpu.memory_space<vmem>>, vector<128x128xbf16>
    %cst_11 = arith.constant dense<0.000000e+00> : vector<128x128xf32>
    %17 = tpu.matmul %16, %15, %cst_11 {dimension_numbers = #tpu.dot_dimension_numbers<[1], [0], [0], [1], [0, 0, 1, 1], [], []>} : vector<128x128xbf16>, vector<128x128xbf16>, vector<128x128xf32> -> vector<128x128xf32>
    %c0_12 = arith.constant 0 : index
    %c0_13 = arith.constant 0 : index
    %18 = vector.load %arg8[%c0_12, %c0_13] : memref<128x1xf32, #tpu.memory_space<vmem>>, vector<128x1xf32>
    %19 = vector.broadcast %18 : vector<128x1xf32> to vector<128x128xf32>
    %20 = arith.maximumf %17, %19 : vector<128x128xf32>
    %c0_14 = arith.constant 0 : index
    %c0_15 = arith.constant 0 : index
    %21 = vector.load %arg9[%c0_14, %c0_15] : memref<128x1xf32, #tpu.memory_space<vmem>>, vector<128x1xf32>
    %22 = vector.broadcast %21 : vector<128x1xf32> to vector<128x128xf32>
    %23 = arith.mulf %20, %22 : vector<128x128xf32>
    %c0_16 = arith.constant 0 : index
    %c0_17 = arith.constant 0 : index
    %24 = vector.load %arg10[%c0_16, %c0_17] : memref<128x1xf32, #tpu.memory_space<vmem>>, vector<128x1xf32>
    %25 = vector.broadcast %24 : vector<128x1xf32> to vector<128x128xf32>
    %26 = arith.addf %23, %25 : vector<128x128xf32>
    %27 = vector.extract_strided_slice %26 {offsets = [0, 0], sizes = [64, 128], strides = [1, 1]} : vector<128x128xf32> to vector<64x128xf32>
    %28 = vector.extract_strided_slice %26 {offsets = [64, 0], sizes = [64, 128], strides = [1, 1]} : vector<128x128xf32> to vector<64x128xf32>
    %29 = arith.maximumf %27, %28 : vector<64x128xf32>
    %30 = arith.truncf %29 : vector<64x128xf32> to vector<64x128xbf16>
    %c0_18 = arith.constant 0 : index
    %c0_19 = arith.constant 0 : index
    %31 = vector.load %arg11[%c0_18, %c0_19] : memref<32x64xbf16, #tpu.memory_space<vmem>>, vector<32x64xbf16>
    %cst_20 = arith.constant dense<0.000000e+00> : vector<32x128xf32>
    %32 = tpu.matmul %31, %30, %cst_20 {dimension_numbers = #tpu.dot_dimension_numbers<[1], [0], [0], [1], [0, 0, 1, 1], [], []>} : vector<32x64xbf16>, vector<64x128xbf16>, vector<32x128xf32> -> vector<32x128xf32>
    %c0_21 = arith.constant 0 : index
    %c0_22 = arith.constant 0 : index
    %33 = vector.load %arg12[%c0_21, %c0_22] : memref<32x1xf32, #tpu.memory_space<vmem>>, vector<32x1xf32>
    %34 = vector.broadcast %33 : vector<32x1xf32> to vector<32x128xf32>
    %35 = arith.maximumf %32, %34 : vector<32x128xf32>
    %c0_23 = arith.constant 0 : index
    %c0_24 = arith.constant 0 : index
    %36 = vector.load %arg13[%c0_23, %c0_24] : memref<32x1xf32, #tpu.memory_space<vmem>>, vector<32x1xf32>
    %37 = vector.broadcast %36 : vector<32x1xf32> to vector<32x128xf32>
    %38 = arith.mulf %35, %37 : vector<32x128xf32>
    %c0_25 = arith.constant 0 : index
    %c0_26 = arith.constant 0 : index
    %39 = vector.load %arg14[%c0_25, %c0_26] : memref<32x1xf32, #tpu.memory_space<vmem>>, vector<32x1xf32>
    %40 = vector.broadcast %39 : vector<32x1xf32> to vector<32x128xf32>
    %41 = arith.addf %38, %40 : vector<32x128xf32>
    %42 = arith.truncf %41 : vector<32x128xf32> to vector<32x128xbf16>
    %c0_27 = arith.constant 0 : index
    %c0_28 = arith.constant 0 : index
    %43 = vector.load %arg15[%c0_27, %c0_28] : memref<5x32xbf16, #tpu.memory_space<vmem>>, vector<5x32xbf16>
    %cst_29 = arith.constant dense<0.000000e+00> : vector<5x128xf32>
    %44 = tpu.matmul %43, %42, %cst_29 {dimension_numbers = #tpu.dot_dimension_numbers<[1], [0], [0], [1], [0, 0, 1, 1], [], []>} : vector<5x32xbf16>, vector<32x128xbf16>, vector<5x128xf32> -> vector<5x128xf32>
    %c0_30 = arith.constant 0 : index
    %c0_31 = arith.constant 0 : index
    %45 = vector.load %arg16[%c0_30, %c0_31] : memref<5x1xf32, #tpu.memory_space<vmem>>, vector<5x1xf32>
    %c0_32 = arith.constant 0 : index
    %c0_33 = arith.constant 0 : index
    %46 = vector.load %arg2[%c0_32, %c0_33] : memref<1x128xf32, #tpu.memory_space<vmem>>, vector<1x128xf32>
    %47 = vector.broadcast %45 : vector<5x1xf32> to vector<5x128xf32>
    %48 = vector.broadcast %46 : vector<1x128xf32> to vector<5x128xf32>
    %49 = arith.mulf %47, %48 : vector<5x128xf32>
    %50 = arith.addf %44, %49 : vector<5x128xf32>
    %c0_34 = arith.constant 0 : index
    %c0_35 = arith.constant 0 : index
    %51 = vector.load %arg17[%c0_34, %c0_35] : memref<5x1xf32, #tpu.memory_space<vmem>>, vector<5x1xf32>
    %52 = vector.broadcast %51 : vector<5x1xf32> to vector<5x128xf32>
    %53 = arith.addf %50, %52 : vector<5x128xf32>
    %c0_36 = arith.constant 0 : index
    %c0_37 = arith.constant 0 : index
    %54 = vector.load %arg18[%c0_36, %c0_37] : memref<5x128xf32, #tpu.memory_space<vmem>>, vector<5x128xf32>
    tpu.vector_store %arg18[%c0_36, %c0_37], %53 {strides = array<i32>} : memref<5x128xf32, #tpu.memory_space<vmem>>, vector<5x128xf32>,
    return
  }
  func.func @transform_0(%arg0: i32) -> (i32, i32) {
    %c0_i32 = arith.constant 0 : i32
    %c0_i32_0 = arith.constant 0 : i32
    return %c0_i32, %arg0 : i32, i32
  }
  func.func @transform_1(%arg0: i32) -> (i32, i32) {
    %c0_i32 = arith.constant 0 : i32
    %c0_i32_0 = arith.constant 0 : i32
    return %c0_i32, %arg0 : i32, i32
  }
  func.func @transform_2(%arg0: i32) -> (i32, i32) {
    %c0_i32 = arith.constant 0 : i32
    %c0_i32_0 = arith.constant 0 : i32
    %c0_i32_1 = arith.constant 0 : i32
    return %c0_i32, %c0_i32_0 : i32, i32
  }
  func.func @transform_3(%arg0: i32) -> (i32, i32) {
    %c0_i32 = arith.constant 0 : i32
    %c0_i32_0 = arith.constant 0 : i32
    %c0_i32_1 = arith.constant 0 : i32
    return %c0_i32, %c0_i32_0 : i32, i32
  }
  func.func @transform_4(%arg0: i32) -> (i32, i32) {
    %c0_i32 = arith.constant 0 : i32
    %c0_i32_0 = arith.constant 0 : i32
    %c0_i32_1 = arith.constant 0 : i32
    return %c0_i32, %c0_i32_0 : i32, i32
  }
  func.func @transform_5(%arg0: i32) -> (i32, i32) {
    %c0_i32 = arith.constant 0 : i32
    %c0_i32_0 = arith.constant 0 : i32
    %c0_i32_1 = arith.constant 0 : i32
    return %c0_i32, %c0_i32_0 : i32, i32
  }
  func.func @transform_6(%arg0: i32) -> (i32, i32) {
    %c0_i32 = arith.constant 0 : i32
    %c0_i32_0 = arith.constant 0 : i32
    %c0_i32_1 = arith.constant 0 : i32
    return %c0_i32, %c0_i32_0 : i32, i32
  }
  func.func @transform_7(%arg0: i32) -> (i32, i32) {
    %c0_i32 = arith.constant 0 : i32
    %c0_i32_0 = arith.constant 0 : i32
    %c0_i32_1 = arith.constant 0 : i32
    return %c0_i32, %c0_i32_0 : i32, i32
  }
  func.func @transform_8(%arg0: i32) -> (i32, i32) {
    %c0_i32 = arith.constant 0 : i32
    %c0_i32_0 = arith.constant 0 : i32
    %c0_i32_1 = arith.constant 0 : i32
    return %c0_i32, %c0_i32_0 : i32, i32
  }
  func.func @transform_9(%arg0: i32) -> (i32, i32) {
    %c0_i32 = arith.constant 0 : i32
    %c0_i32_0 = arith.constant 0 : i32
    %c0_i32_1 = arith.constant 0 : i32
    return %c0_i32, %c0_i32_0 : i32, i32
  }
  func.func @transform_10(%arg0: i32) -> (i32, i32) {
    %c0_i32 = arith.constant 0 : i32
    %c0_i32_0 = arith.constant 0 : i32
    %c0_i32_1 = arith.constant 0 : i32
    return %c0_i32, %c0_i32_0 : i32, i32
  }
  func.func @transform_11(%arg0: i32) -> (i32, i32) {
    %c0_i32 = arith.constant 0 : i32
    %c0_i32_0 = arith.constant 0 : i32
    %c0_i32_1 = arith.constant 0 : i32
    return %c0_i32, %c0_i32_0 : i32, i32
  }
  func.func @transform_12(%arg0: i32) -> (i32, i32) {
    %c0_i32 = arith.constant 0 : i32
    %c0_i32_0 = arith.constant 0 : i32
    %c0_i32_1 = arith.constant 0 : i32
    return %c0_i32, %c0_i32_0 : i32, i32
  }
  func.func @transform_13(%arg0: i32) -> (i32, i32) {
    %c0_i32 = arith.constant 0 : i32
    %c0_i32_0 = arith.constant 0 : i32
    %c0_i32_1 = arith.constant 0 : i32
    return %c0_i32, %c0_i32_0 : i32, i32
  }
  func.func @transform_14(%arg0: i32) -> (i32, i32) {
    %c0_i32 = arith.constant 0 : i32
    %c0_i32_0 = arith.constant 0 : i32
    %c0_i32_1 = arith.constant 0 : i32
    return %c0_i32, %c0_i32_0 : i32, i32
  }
  func.func @transform_15(%arg0: i32) -> (i32, i32) {
    %c0_i32 = arith.constant 0 : i32
    %c0_i32_0 = arith.constant 0 : i32
    %c0_i32_1 = arith.constant 0 : i32
    return %c0_i32, %c0_i32_0 : i32, i32
  }
  func.func @transform_16(%arg0: i32) -> (i32, i32) {
    %c0_i32 = arith.constant 0 : i32
    %c0_i32_0 = arith.constant 0 : i32
    %c0_i32_1 = arith.constant 0 : i32
    return %c0_i32, %c0_i32_0 : i32, i32
  }
  func.func @transform_17(%arg0: i32) -> (i32, i32) {
    %c0_i32 = arith.constant 0 : i32
    %c0_i32_0 = arith.constant 0 : i32
    return %c0_i32, %arg0 : i32, i32
  }
}

</mosaic_0001>

<llo_original>
// kernel: tpu_custom_call.1
$region0: #{tpu_custom_call.1}
  #allocation0 [shape = 'u32[]', space=smem, size = 0x4, offset = 0x4, fixed_abs, tag = 'smem constant byte address 0x4 - core index']
  #allocation1 [shape = 'u32[144,128]{1,0:T(1,128)}', space=vmem, size = 0x12000, scoped, tag = 'internal scratch']
  %s0 = inlined_call_operand.vmem [shape: f32[16,128], index: 0, kind: input, shape index: {}]
  %s1 = inlined_call_operand.vmem [shape: f32[1,128], index: 1, kind: input, shape index: {}]
  %s2 = inlined_call_operand.vmem [shape: f32[256,16], index: 2, kind: input, shape index: {}]
  %s3 = inlined_call_operand.vmem [shape: f32[256,1], index: 3, kind: input, shape index: {}]
  %s4 = inlined_call_operand.vmem [shape: f32[256,1], index: 4, kind: input, shape index: {}]
  %s5 = inlined_call_operand.vmem [shape: f32[256,1], index: 5, kind: input, shape index: {}]
  %s6 = inlined_call_operand.vmem [shape: bf16[128,128], index: 6, kind: input, shape index: {}]
  %s7 = inlined_call_operand.vmem [shape: f32[128,1], index: 7, kind: input, shape index: {}]
  %s8 = inlined_call_operand.vmem [shape: f32[128,1], index: 8, kind: input, shape index: {}]
  %s9 = inlined_call_operand.vmem [shape: f32[128,1], index: 9, kind: input, shape index: {}]
  %s10 = inlined_call_operand.vmem [shape: bf16[32,64], index: 10, kind: input, shape index: {}]
  %s11 = inlined_call_operand.vmem [shape: f32[32,1], index: 11, kind: input, shape index: {}]
  %s12 = inlined_call_operand.vmem [shape: f32[32,1], index: 12, kind: input, shape index: {}]
  %s13 = inlined_call_operand.vmem [shape: f32[32,1], index: 13, kind: input, shape index: {}]
  %s14 = inlined_call_operand.vmem [shape: bf16[5,32], index: 14, kind: input, shape index: {}]
  %s15 = inlined_call_operand.vmem [shape: f32[5,1], index: 15, kind: input, shape index: {}]
  %s16 = inlined_call_operand.vmem [shape: f32[5,1], index: 16, kind: input, shape index: {}]
  %s17 = inlined_call_operand.hbm [shape: f32[5,128], index: 17, kind: output, shape index: {}]
  %s18 = sld [smem:[#allocation0]]
  $region78: #{tpu_custom_call.1} parent=0
    _
  %s20 = ssub.s32 1, %s18
  %s21 = scalar_select 0, %s20, %s18
  $region1: #{tpu_custom_call.1} parent=0
    #allocation2 [shape = 'u8[4096]{0}', space=vmem, size = 0x1000, scoped, tag = 'output window, operand 0, single buffered']
    #allocation3 [shape = 's32[1]{0}', space=sflag, size = 0x4, scoped, tag = 'scoped memory for tpu_custom_call.1']
    %22 = vsyncpa [#allocation3], 0
    // Predicated region
    $region2: #{tpu_custom_call.1} parent=1 // pred_check
      _
    $region3: #{tpu_custom_call.1} parent=1 // pred_check_branch
      %24 = sbr.rel (0) target = $region5
    $region4: #{tpu_custom_call.1} parent=1 // pred_region
      _
    $region5: #{tpu_custom_call.1} parent=1 // pred_fallthru
      _
    // Predicated region
    $region6: #{tpu_custom_call.1} parent=1 // pred_check
      _
    $region7: #{tpu_custom_call.1} parent=1 // pred_check_branch
      %26 = sbr.rel (0) target = $region9
    $region8: #{tpu_custom_call.1} parent=1 // pred_region
      _
    $region9: #{tpu_custom_call.1} parent=1 // pred_fallthru
      _
    // Predicated region
    $region10: #{tpu_custom_call.1} parent=1 // pred_check
      _
    $region11: #{tpu_custom_call.1} parent=1 // pred_check_branch
      %28 = sbr.rel (0) target = $region13
    $region12: #{tpu_custom_call.1} parent=1 // pred_region
      _
    $region13: #{tpu_custom_call.1} parent=1 // pred_fallthru
      _
    // Predicated region
    $region14: #{tpu_custom_call.1} parent=1 // pred_check
      _
    $region15: #{tpu_custom_call.1} parent=1 // pred_check_branch
      %30 = sbr.rel (0) target = $region17
    $region16: #{tpu_custom_call.1} parent=1 // pred_region
      _
    $region17: #{tpu_custom_call.1} parent=1 // pred_fallthru
      _
    // Predicated region
    $region18: #{tpu_custom_call.1} parent=1 // pred_check
      _
    $region19: #{tpu_custom_call.1} parent=1 // pred_check_branch
      %32 = sbr.rel (0) target = $region21
    $region20: #{tpu_custom_call.1} parent=1 // pred_region
      _
    $region21: #{tpu_custom_call.1} parent=1 // pred_fallthru
      _
    // Predicated region
    $region22: #{tpu_custom_call.1} parent=1 // pred_check
      _
    $region23: #{tpu_custom_call.1} parent=1 // pred_check_branch
      %34 = sbr.rel (0) target = $region25
    $region24: #{tpu_custom_call.1} parent=1 // pred_region
      _
    $region25: #{tpu_custom_call.1} parent=1 // pred_fallthru
      _
    // Predicated region
    $region26: #{tpu_custom_call.1} parent=1 // pred_check
      _
    $region27: #{tpu_custom_call.1} parent=1 // pred_check_branch
      %36 = sbr.rel (0) target = $region29
    $region28: #{tpu_custom_call.1} parent=1 // pred_region
      _
    $region29: #{tpu_custom_call.1} parent=1 // pred_fallthru
      _
    // Predicated region
    $region30: #{tpu_custom_call.1} parent=1 // pred_check
      _
    $region31: #{tpu_custom_call.1} parent=1 // pred_check_branch
      %38 = sbr.rel (0) target = $region33
    $region32: #{tpu_custom_call.1} parent=1 // pred_region
      _
    $region33: #{tpu_custom_call.1} parent=1 // pred_fallthru
      _
    // Predicated region
    $region34: #{tpu_custom_call.1} parent=1 // pred_check
      _
    $region35: #{tpu_custom_call.1} parent=1 // pred_check_branch
      %40 = sbr.rel (0) target = $region37
    $region36: #{tpu_custom_call.1} parent=1 // pred_region
      _
    $region37: #{tpu_custom_call.1} parent=1 // pred_fallthru
      _
    // Predicated region
    $region38: #{tpu_custom_call.1} parent=1 // pred_check
      _
    $region39: #{tpu_custom_call.1} parent=1 // pred_check_branch
      %42 = sbr.rel (0) target = $region41
    $region40: #{tpu_custom_call.1} parent=1 // pred_region
      _
    $region41: #{tpu_custom_call.1} parent=1 // pred_fallthru
      _
    // Predicated region
    $region42: #{tpu_custom_call.1} parent=1 // pred_check
      _
    $region43: #{tpu_custom_call.1} parent=1 // pred_check_branch
      %44 = sbr.rel (0) target = $region45
    $region44: #{tpu_custom_call.1} parent=1 // pred_region
      _
    $region45: #{tpu_custom_call.1} parent=1 // pred_fallthru
      _
    // Predicated region
    $region46: #{tpu_custom_call.1} parent=1 // pred_check
      _
    $region47: #{tpu_custom_call.1} parent=1 // pred_check_branch
      %46 = sbr.rel (0) target = $region49
    $region48: #{tpu_custom_call.1} parent=1 // pred_region
      _
    $region49: #{tpu_custom_call.1} parent=1 // pred_fallthru
      _
    // Predicated region
    $region50: #{tpu_custom_call.1} parent=1 // pred_check
      _
    $region51: #{tpu_custom_call.1} parent=1 // pred_check_branch
      %48 = sbr.rel (0) target = $region53
    $region52: #{tpu_custom_call.1} parent=1 // pred_region
      _
    $region53: #{tpu_custom_call.1} parent=1 // pred_fallthru
      _
    // Predicated region
    $region54: #{tpu_custom_call.1} parent=1 // pred_check
      _
    $region55: #{tpu_custom_call.1} parent=1 // pred_check_branch
      %50 = sbr.rel (0) target = $region57
    $region56: #{tpu_custom_call.1} parent=1 // pred_region
      _
    $region57: #{tpu_custom_call.1} parent=1 // pred_fallthru
      _
    // Predicated region
    $region58: #{tpu_custom_call.1} parent=1 // pred_check
      _
    $region59: #{tpu_custom_call.1} parent=1 // pred_check_branch
      %52 = sbr.rel (0) target = $region61
    $region60: #{tpu_custom_call.1} parent=1 // pred_region
      _
    $region61: #{tpu_custom_call.1} parent=1 // pred_fallthru
      _
    // Predicated region
    $region62: #{tpu_custom_call.1} parent=1 // pred_check
      _
    $region63: #{tpu_custom_call.1} parent=1 // pred_check_branch
      %54 = sbr.rel (0) target = $region65
    $region64: #{tpu_custom_call.1} parent=1 // pred_region
      _
    $region65: #{tpu_custom_call.1} parent=1 // pred_fallthru
      _
    // Predicated region
    $region66: #{tpu_custom_call.1} parent=1 // pred_check
      _
    $region67: #{tpu_custom_call.1} parent=1 // pred_check_branch
      %56 = sbr.rel (0) target = $region69
    $region68: #{tpu_custom_call.1} parent=1 // pred_region
      _
    $region69: #{tpu_custom_call.1} parent=1 // pred_fallthru
      _
    %v58 = vld [vmem:[%s2] sm:$0xff]
    %v59 = vld [vmem:[%s2 + $0x8] sm:$0xff]
    %v60 = vld [vmem:[%s2 + $0x10] sm:$0xff]
    %v61 = vld [vmem:[%s2 + $0x18] sm:$0xff]
    %v62 = vld [vmem:[%s2 + $0x20] sm:$0xff]
    %v63 = vld [vmem:[%s2 + $0x28] sm:$0xff]
    %v64 = vld [vmem:[%s2 + $0x30] sm:$0xff]
    %v65 = vld [vmem:[%s2 + $0x38] sm:$0xff]
    %v66 = vld [vmem:[%s2 + $0x40] sm:$0xff]
    %v67 = vld [vmem:[%s2 + $0x48] sm:$0xff]
    %v68 = vld [vmem:[%s2 + $0x50] sm:$0xff]
    %v69 = vld [vmem:[%s2 + $0x58] sm:$0xff]
    %v70 = vld [vmem:[%s2 + $0x60] sm:$0xff]
    %v71 = vld [vmem:[%s2 + $0x68] sm:$0xff]
    %v72 = vld [vmem:[%s2 + $0x70] sm:$0xff]
    %v73 = vld [vmem:[%s2 + $0x78] sm:$0xff]
    %v74 = vld [vmem:[%s2 + $0x80] sm:$0xff]
    %v75 = vld [vmem:[%s2 + $0x88] sm:$0xff]
    %v76 = vld [vmem:[%s2 + $0x90] sm:$0xff]
    %v77 = vld [vmem:[%s2 + $0x98] sm:$0xff]
    %v78 = vld [vmem:[%s2 + $0xa0] sm:$0xff]
    %v79 = vld [vmem:[%s2 + $0xa8] sm:$0xff]
    %v80 = vld [vmem:[%s2 + $0xb0] sm:$0xff]
    %v81 = vld [vmem:[%s2 + $0xb8] sm:$0xff]
    %v82 = vld [vmem:[%s2 + $0xc0] sm:$0xff]
    %v83 = vld [vmem:[%s2 + $0xc8] sm:$0xff]
    %v84 = vld [vmem:[%s2 + $0xd0] sm:$0xff]
    %v85 = vld [vmem:[%s2 + $0xd8] sm:$0xff]
    %v86 = vld [vmem:[%s2 + $0xe0] sm:$0xff]
    %v87 = vld [vmem:[%s2 + $0xe8] sm:$0xff]
    %v88 = vld [vmem:[%s2 + $0xf0] sm:$0xff]
    %v89 = vld [vmem:[%s2 + $0xf8] sm:$0xff]
    %v90 = vld [vmem:[%s0] sm:$0xff]
    %v91 = vld [vmem:[%s0 + $0x8] sm:$0xff]
    %vm92 = vcmask 130048
    %v94 = vsel %vm92, %v58, 0
    %v97 = vsel %vm92, %v59, 0
    %v100 = vsel %vm92, %v60, 0
    %v103 = vsel %vm92, %v61, 0
    %v106 = vsel %vm92, %v62, 0
    %v109 = vsel %vm92, %v63, 0
    %v112 = vsel %vm92, %v64, 0
    %v115 = vsel %vm92, %v65, 0
    %v118 = vsel %vm92, %v66, 0
    %v121 = vsel %vm92, %v67, 0
    %v124 = vsel %vm92, %v68, 0
    %v127 = vsel %vm92, %v69, 0
    %v130 = vsel %vm92, %v70, 0
    %v133 = vsel %vm92, %v71, 0
    %v136 = vsel %vm92, %v72, 0
    %v139 = vsel %vm92, %v73, 0
    %v142 = vsel %vm92, %v74, 0
    %v145 = vsel %vm92, %v75, 0
    %v148 = vsel %vm92, %v76, 0
    %v151 = vsel %vm92, %v77, 0
    %v154 = vsel %vm92, %v78, 0
    %v157 = vsel %vm92, %v79, 0
    %v160 = vsel %vm92, %v80, 0
    %v163 = vsel %vm92, %v81, 0
    %v166 = vsel %vm92, %v82, 0
    %v169 = vsel %vm92, %v83, 0
    %v172 = vsel %vm92, %v84, 0
    %v175 = vsel %vm92, %v85, 0
    %v178 = vsel %vm92, %v86, 0
    %v181 = vsel %vm92, %v87, 0
    %v184 = vsel %vm92, %v88, 0
    %v187 = vsel %vm92, %v89, 0
    %189 = vmatprep.subr.mxu0 0.0
    %190 = vmatpush1.msra.mxu0 %v90
    %191 = vmatprep.subr.mxu0 0.0
    %192 = vmatpush1.msra.mxu0 %v91
    %193 = vmatprep.subr.mxu0 0.0
    %194 = vmatpush1.msra.mxu0 0.0
    %195 = vmatprep.subr.mxu0 0.0
    %196 = vmatpush1.msra.mxu0 0.0
    %197 = vmatprep.subr.mxu0 0.0
    %198 = vmatpush1.msra.mxu0 0.0
    %199 = vmatprep.subr.mxu0 0.0
    %200 = vmatpush1.msra.mxu0 0.0
    %201 = vmatprep.subr.mxu0 0.0
    %202 = vmatpush1.msra.mxu0 0.0
    %203 = vmatprep.subr.mxu0 0.0
    %204 = vmatpush1.msra.mxu0 0.0
    %205 = vmatprep.subr.mxu0 0.0
    %206 = vmatpush1.msra.mxu0 0.0
    %207 = vmatprep.subr.mxu0 0.0
    %208 = vmatpush1.msra.mxu0 0.0
    %209 = vmatprep.subr.mxu0 0.0
    %210 = vmatpush1.msra.mxu0 0.0
    %211 = vmatprep.subr.mxu0 0.0
    %212 = vmatpush1.msra.mxu0 0.0
    %213 = vmatprep.subr.mxu0 0.0
    %214 = vmatpush1.msra.mxu0 0.0
    %215 = vmatprep.subr.mxu0 0.0
    %216 = vmatpush1.msra.mxu0 0.0
    %217 = vmatprep.subr.mxu0 0.0
    %218 = vmatpush1.msra.mxu0 0.0
    %219 = vmatprep.subr.mxu0 0.0
    %220 = vmatpush1.msra.mxu0 0.0
    %221 = vmatprep.subr.mxu0 0.0
    %222 = vmatpush1.msra.mxu0 0.0
    %223 = vmatprep.subr.mxu0 0.0
    %224 = vmatpush1.msra.mxu0 0.0
    %225 = vmatprep.subr.mxu0 0.0
    %226 = vmatpush1.msra.mxu0 0.0
    %227 = vmatprep.subr.mxu0 0.0
    %228 = vmatpush1.msra.mxu0 0.0
    %229 = vmatprep.subr.mxu0 0.0
    %230 = vmatpush1.msra.mxu0 0.0
    %231 = vmatprep.subr.mxu0 0.0
    %232 = vmatpush1.msra.mxu0 0.0
    %233 = vmatprep.subr.mxu0 0.0
    %234 = vmatpush1.msra.mxu0 0.0
    %235 = vmatprep.subr.mxu0 0.0
    %236 = vmatpush1.msra.mxu0 0.0
    %237 = vmatprep.subr.mxu0 0.0
    %238 = vmatpush1.msra.mxu0 0.0
    %239 = vmatprep.subr.mxu0 0.0
    %240 = vmatpush1.msra.mxu0 0.0
    %241 = vmatprep.subr.mxu0 0.0
    %242 = vmatpush1.msra.mxu0 0.0
    %243 = vmatprep.subr.mxu0 0.0
    %244 = vmatpush1.msra.mxu0 0.0
    %245 = vmatprep.subr.mxu0 0.0
    %246 = vmatpush1.msra.mxu0 0.0
    %247 = vmatprep.subr.mxu0 0.0
    %248 = vmatpush1.msra.mxu0 0.0
    %249 = vmatprep.subr.mxu0 0.0
    %250 = vmatpush1.msra.mxu0 0.0
    %251 = vmatprep.subr.mxu0 0.0
    %252 = vmatpush1.msra.mxu0 0.0
    %253 = vmatprep.mubr.f32.mxu0 0.0
    %254 = vmatmul.mubr.f32.gmra.mrb[0].mxu0 %v94
    %v255 = vpop.f32.mrb[0].mxu0
    %v256 = vadd.f32 0.0, %v255
    %v257 = vpop.f32.mrb[0].mxu0
    %258 = vmatprep.mubr.f32.mxu0 0.0
    %259 = vmatmul.mubr.f32.gmra.mrb[0].mxu0 %v97
    %v260 = vpop.f32.mrb[0].mxu0
    %v261 = vadd.f32 0.0, %v260
    %v262 = vpop.f32.mrb[0].mxu0
    %263 = vmatprep.mubr.f32.mxu0 0.0
    %264 = vmatmul.mubr.f32.gmra.mrb[0].mxu0 %v100
    %v265 = vpop.f32.mrb[0].mxu0
    %v266 = vadd.f32 0.0, %v265
    %v267 = vpop.f32.mrb[0].mxu0
    %268 = vmatprep.mubr.f32.mxu0 0.0
    %269 = vmatmul.mubr.f32.gmra.mrb[0].mxu0 %v103
    %v270 = vpop.f32.mrb[0].mxu0
    %v271 = vadd.f32 0.0, %v270
    %v272 = vpop.f32.mrb[0].mxu0
    %273 = vmatprep.mubr.f32.mxu0 0.0
    %274 = vmatmul.mubr.f32.gmra.mrb[0].mxu0 %v106
    %v275 = vpop.f32.mrb[0].mxu0
    %v276 = vadd.f32 0.0, %v275
    %v277 = vpop.f32.mrb[0].mxu0
    %278 = vmatprep.mubr.f32.mxu0 0.0
    %279 = vmatmul.mubr.f32.gmra.mrb[0].mxu0 %v109
    %v280 = vpop.f32.mrb[0].mxu0
    %v281 = vadd.f32 0.0, %v280
    %v282 = vpop.f32.mrb[0].mxu0
    %283 = vmatprep.mubr.f32.mxu0 0.0
    %284 = vmatmul.mubr.f32.gmra.mrb[0].mxu0 %v112
    %v285 = vpop.f32.mrb[0].mxu0
    %v286 = vadd.f32 0.0, %v285
    %v287 = vpop.f32.mrb[0].mxu0
    %288 = vmatprep.mubr.f32.mxu0 0.0
    %289 = vmatmul.mubr.f32.gmra.mrb[0].mxu0 %v115
    %v290 = vpop.f32.mrb[0].mxu0
    %v291 = vadd.f32 0.0, %v290
    %v292 = vpop.f32.mrb[0].mxu0
    %293 = vmatprep.mubr.f32.mxu0 0.0
    %294 = vmatmul.mubr.f32.gmra.mrb[0].mxu0 %v118
    %v295 = vpop.f32.mrb[0].mxu0
    %v296 = vadd.f32 0.0, %v295
    %v297 = vpop.f32.mrb[0].mxu0
    %298 = vmatprep.mubr.f32.mxu0 0.0
    %299 = vmatmul.mubr.f32.gmra.mrb[0].mxu0 %v121
    %v300 = vpop.f32.mrb[0].mxu0
    %v301 = vadd.f32 0.0, %v300
    %v302 = vpop.f32.mrb[0].mxu0
    %303 = vmatprep.mubr.f32.mxu0 0.0
    %304 = vmatmul.mubr.f32.gmra.mrb[0].mxu0 %v124
    %v305 = vpop.f32.mrb[0].mxu0
    %v306 = vadd.f32 0.0, %v305
    %v307 = vpop.f32.mrb[0].mxu0
    %308 = vmatprep.mubr.f32.mxu0 0.0
    %309 = vmatmul.mubr.f32.gmra.mrb[0].mxu0 %v127
    %v310 = vpop.f32.mrb[0].mxu0
    %v311 = vadd.f32 0.0, %v310
    %v312 = vpop.f32.mrb[0].mxu0
    %313 = vmatprep.mubr.f32.mxu0 0.0
    %314 = vmatmul.mubr.f32.gmra.mrb[0].mxu0 %v130
    %v315 = vpop.f32.mrb[0].mxu0
    %v316 = vadd.f32 0.0, %v315
    %v317 = vpop.f32.mrb[0].mxu0
    %318 = vmatprep.mubr.f32.mxu0 0.0
    %319 = vmatmul.mubr.f32.gmra.mrb[0].mxu0 %v133
    %v320 = vpop.f32.mrb[0].mxu0
    %v321 = vadd.f32 0.0, %v320
    %v322 = vpop.f32.mrb[0].mxu0
    %323 = vmatprep.mubr.f32.mxu0 0.0
    %324 = vmatmul.mubr.f32.gmra.mrb[0].mxu0 %v136
    %v325 = vpop.f32.mrb[0].mxu0
    %v326 = vadd.f32 0.0, %v325
    %v327 = vpop.f32.mrb[0].mxu0
    %328 = vmatprep.mubr.f32.mxu0 0.0
    %329 = vmatmul.mubr.f32.gmra.mrb[0].mxu0 %v139
    %v330 = vpop.f32.mrb[0].mxu0
    %v331 = vadd.f32 0.0, %v330
    %v332 = vpop.f32.mrb[0].mxu0
    %333 = vmatprep.mubr.f32.mxu0 0.0
    %334 = vmatmul.mubr.f32.gmra.mrb[0].mxu0 %v142
    %v335 = vpop.f32.mrb[0].mxu0
    %v336 = vadd.f32 0.0, %v335
    %v337 = vpop.f32.mrb[0].mxu0
    %338 = vmatprep.mubr.f32.mxu0 0.0
    %339 = vmatmul.mubr.f32.gmra.mrb[0].mxu0 %v145
    %v340 = vpop.f32.mrb[0].mxu0
    %v341 = vadd.f32 0.0, %v340
    %v342 = vpop.f32.mrb[0].mxu0
    %343 = vmatprep.mubr.f32.mxu0 0.0
    %344 = vmatmul.mubr.f32.gmra.mrb[0].mxu0 %v148
    %v345 = vpop.f32.mrb[0].mxu0
    %v346 = vadd.f32 0.0, %v345
    %v347 = vpop.f32.mrb[0].mxu0
    %348 = vmatprep.mubr.f32.mxu0 0.0
    %349 = vmatmul.mubr.f32.gmra.mrb[0].mxu0 %v151
    %v350 = vpop.f32.mrb[0].mxu0
    %v351 = vadd.f32 0.0, %v350
    %v352 = vpop.f32.mrb[0].mxu0
    %353 = vmatprep.mubr.f32.mxu0 0.0
    %354 = vmatmul.mubr.f32.gmra.mrb[0].mxu0 %v154
    %v355 = vpop.f32.mrb[0].mxu0
    %v356 = vadd.f32 0.0, %v355
    %v357 = vpop.f32.mrb[0].mxu0
    %358 = vmatprep.mubr.f32.mxu0 0.0
    %359 = vmatmul.mubr.f32.gmra.mrb[0].mxu0 %v157
    %v360 = vpop.f32.mrb[0].mxu0
    %v361 = vadd.f32 0.0, %v360
    %v362 = vpop.f32.mrb[0].mxu0
    %363 = vmatprep.mubr.f32.mxu0 0.0
    %364 = vmatmul.mubr.f32.gmra.mrb[0].mxu0 %v160
    %v365 = vpop.f32.mrb[0].mxu0
    %v366 = vadd.f32 0.0, %v365
    %v367 = vpop.f32.mrb[0].mxu0
    %368 = vmatprep.mubr.f32.mxu0 0.0
    %369 = vmatmul.mubr.f32.gmra.mrb[0].mxu0 %v163
    %v370 = vpop.f32.mrb[0].mxu0
    %v371 = vadd.f32 0.0, %v370
    %v372 = vpop.f32.mrb[0].mxu0
    %373 = vmatprep.mubr.f32.mxu0 0.0
    %374 = vmatmul.mubr.f32.gmra.mrb[0].mxu0 %v166
    %v375 = vpop.f32.mrb[0].mxu0
    %v376 = vadd.f32 0.0, %v375
    %v377 = vpop.f32.mrb[0].mxu0
    %378 = vmatprep.mubr.f32.mxu0 0.0
    %379 = vmatmul.mubr.f32.gmra.mrb[0].mxu0 %v169
    %v380 = vpop.f32.mrb[0].mxu0
    %v381 = vadd.f32 0.0, %v380
    %v382 = vpop.f32.mrb[0].mxu0
    %383 = vmatprep.mubr.f32.mxu0 0.0
    %384 = vmatmul.mubr.f32.gmra.mrb[0].mxu0 %v172
    %v385 = vpop.f32.mrb[0].mxu0
    %v386 = vadd.f32 0.0, %v385
    %v387 = vpop.f32.mrb[0].mxu0
    %388 = vmatprep.mubr.f32.mxu0 0.0
    %389 = vmatmul.mubr.f32.gmra.mrb[0].mxu0 %v175
    %v390 = vpop.f32.mrb[0].mxu0
    %v391 = vadd.f32 0.0, %v390
    %v392 = vpop.f32.mrb[0].mxu0
    %393 = vmatprep.mubr.f32.mxu0 0.0
    %394 = vmatmul.mubr.f32.gmra.mrb[0].mxu0 %v178
    %v395 = vpop.f32.mrb[0].mxu0
    %v396 = vadd.f32 0.0, %v395
    %v397 = vpop.f32.mrb[0].mxu0
    %398 = vmatprep.mubr.f32.mxu0 0.0
    %399 = vmatmul.mubr.f32.gmra.mrb[0].mxu0 %v181
    %v400 = vpop.f32.mrb[0].mxu0
    %v401 = vadd.f32 0.0, %v400
    %v402 = vpop.f32.mrb[0].mxu0
    %403 = vmatprep.mubr.f32.mxu0 0.0
    %404 = vmatmul.mubr.f32.gmra.mrb[0].mxu0 %v184
    %v405 = vpop.f32.mrb[0].mxu0
    %v406 = vadd.f32 0.0, %v405
    %v407 = vpop.f32.mrb[0].mxu0
    %408 = vmatprep.mubr.f32.mxu0 0.0
    %409 = vmatmul.mubr.f32.gmra.mrb[0].mxu0 %v187
    %v410 = vpop.f32.mrb[0].mxu0
    %v411 = vadd.f32 0.0, %v410
    %v412 = vpop.f32.mrb[0].mxu0
    %413 = vdwg.mxu0
    %v414 = vld [vmem:[%s3] sm:$0xff]
    %v415 = vld [vmem:[%s3 + $0x8] sm:$0xff]
    %v416 = vld [vmem:[%s3 + $0x10] sm:$0xff]
    %v417 = vld [vmem:[%s3 + $0x18] sm:$0xff]
    %v418 = vld [vmem:[%s3 + $0x20] sm:$0xff]
    %v419 = vld [vmem:[%s3 + $0x28] sm:$0xff]
    %v420 = vld [vmem:[%s3 + $0x30] sm:$0xff]
    %v421 = vld [vmem:[%s3 + $0x38] sm:$0xff]
    %v422 = vld [vmem:[%s3 + $0x40] sm:$0xff]
    %v423 = vld [vmem:[%s3 + $0x48] sm:$0xff]
    %v424 = vld [vmem:[%s3 + $0x50] sm:$0xff]
    %v425 = vld [vmem:[%s3 + $0x58] sm:$0xff]
    %v426 = vld [vmem:[%s3 + $0x60] sm:$0xff]
    %v427 = vld [vmem:[%s3 + $0x68] sm:$0xff]
    %v428 = vld [vmem:[%s3 + $0x70] sm:$0xff]
    %v429 = vld [vmem:[%s3 + $0x78] sm:$0xff]
    %v430 = vld [vmem:[%s3 + $0x80] sm:$0xff]
    %v431 = vld [vmem:[%s3 + $0x88] sm:$0xff]
    %v432 = vld [vmem:[%s3 + $0x90] sm:$0xff]
    %v433 = vld [vmem:[%s3 + $0x98] sm:$0xff]
    %v434 = vld [vmem:[%s3 + $0xa0] sm:$0xff]
    %v435 = vld [vmem:[%s3 + $0xa8] sm:$0xff]
    %v436 = vld [vmem:[%s3 + $0xb0] sm:$0xff]
    %v437 = vld [vmem:[%s3 + $0xb8] sm:$0xff]
    %v438 = vld [vmem:[%s3 + $0xc0] sm:$0xff]
    %v439 = vld [vmem:[%s3 + $0xc8] sm:$0xff]
    %v440 = vld [vmem:[%s3 + $0xd0] sm:$0xff]
    %v441 = vld [vmem:[%s3 + $0xd8] sm:$0xff]
    %v442 = vld [vmem:[%s3 + $0xe0] sm:$0xff]
    %v443 = vld [vmem:[%s3 + $0xe8] sm:$0xff]
    %v444 = vld [vmem:[%s3 + $0xf0] sm:$0xff]
    %v445 = vld [vmem:[%s3 + $0xf8] sm:$0xff]
    %447 = vset.pattern.permute.xlu0 0
    %448 = vperm.xlu0 %447, %v414
    %v449 = vpop.permute.xlu0 %448
    %452 = vset.pattern.permute.xlu0 0
    %453 = vperm.xlu0 %452, %v415
    %v454 = vpop.permute.xlu0 %453
    %457 = vset.pattern.permute.xlu0 0
    %458 = vperm.xlu0 %457, %v416
    %v459 = vpop.permute.xlu0 %458
    %462 = vset.pattern.permute.xlu0 0
    %463 = vperm.xlu0 %462, %v417
    %v464 = vpop.permute.xlu0 %463
    %467 = vset.pattern.permute.xlu0 0
    %468 = vperm.xlu0 %467, %v418
    %v469 = vpop.permute.xlu0 %468
    %472 = vset.pattern.permute.xlu0 0
    %473 = vperm.xlu0 %472, %v419
    %v474 = vpop.permute.xlu0 %473
    %477 = vset.pattern.permute.xlu0 0
    %478 = vperm.xlu0 %477, %v420
    %v479 = vpop.permute.xlu0 %478
    %482 = vset.pattern.permute.xlu0 0
    %483 = vperm.xlu0 %482, %v421
    %v484 = vpop.permute.xlu0 %483
    %487 = vset.pattern.permute.xlu0 0
    %488 = vperm.xlu0 %487, %v422
    %v489 = vpop.permute.xlu0 %488
    %492 = vset.pattern.permute.xlu0 0
    %493 = vperm.xlu0 %492, %v423
    %v494 = vpop.permute.xlu0 %493
    %497 = vset.pattern.permute.xlu0 0
    %498 = vperm.xlu0 %497, %v424
    %v499 = vpop.permute.xlu0 %498
    %502 = vset.pattern.permute.xlu0 0
    %503 = vperm.xlu0 %502, %v425
    %v504 = vpop.permute.xlu0 %503
    %507 = vset.pattern.permute.xlu0 0
    %508 = vperm.xlu0 %507, %v426
    %v509 = vpop.permute.xlu0 %508
    %512 = vset.pattern.permute.xlu0 0
    %513 = vperm.xlu0 %512, %v427
    %v514 = vpop.permute.xlu0 %513
    %517 = vset.pattern.permute.xlu0 0
    %518 = vperm.xlu0 %517, %v428
    %v519 = vpop.permute.xlu0 %518
    %522 = vset.pattern.permute.xlu0 0
    %523 = vperm.xlu0 %522, %v429
    %v524 = vpop.permute.xlu0 %523
    %527 = vset.pattern.permute.xlu0 0
    %528 = vperm.xlu0 %527, %v430
    %v529 = vpop.permute.xlu0 %528
    %532 = vset.pattern.permute.xlu0 0
    %533 = vperm.xlu0 %532, %v431
    %v534 = vpop.permute.xlu0 %533
    %537 = vset.pattern.permute.xlu0 0
    %538 = vperm.xlu0 %537, %v432
    %v539 = vpop.permute.xlu0 %538
    %542 = vset.pattern.permute.xlu0 0
    %543 = vperm.xlu0 %542, %v433
    %v544 = vpop.permute.xlu0 %543
    %547 = vset.pattern.permute.xlu0 0
    %548 = vperm.xlu0 %547, %v434
    %v549 = vpop.permute.xlu0 %548
    %552 = vset.pattern.permute.xlu0 0
    %553 = vperm.xlu0 %552, %v435
    %v554 = vpop.permute.xlu0 %553
    %557 = vset.pattern.permute.xlu0 0
    %558 = vperm.xlu0 %557, %v436
    %v559 = vpop.permute.xlu0 %558
    %562 = vset.pattern.permute.xlu0 0
    %563 = vperm.xlu0 %562, %v437
    %v564 = vpop.permute.xlu0 %563
    %567 = vset.pattern.permute.xlu0 0
    %568 = vperm.xlu0 %567, %v438
    %v569 = vpop.permute.xlu0 %568
    %572 = vset.pattern.permute.xlu0 0
    %573 = vperm.xlu0 %572, %v439
    %v574 = vpop.permute.xlu0 %573
    %577 = vset.pattern.permute.xlu0 0
    %578 = vperm.xlu0 %577, %v440
    %v579 = vpop.permute.xlu0 %578
    %582 = vset.pattern.permute.xlu0 0
    %583 = vperm.xlu0 %582, %v441
    %v584 = vpop.permute.xlu0 %583
    %587 = vset.pattern.permute.xlu0 0
    %588 = vperm.xlu0 %587, %v442
    %v589 = vpop.permute.xlu0 %588
    %592 = vset.pattern.permute.xlu0 0
    %593 = vperm.xlu0 %592, %v443
    %v594 = vpop.permute.xlu0 %593
    %597 = vset.pattern.permute.xlu0 0
    %598 = vperm.xlu0 %597, %v444
    %v599 = vpop.permute.xlu0 %598
    %602 = vset.pattern.permute.xlu0 0
    %603 = vperm.xlu0 %602, %v445
    %v604 = vpop.permute.xlu0 %603
    %v606 = vmax.f32 %v256, %v449
    %v607 = vmax.f32 %v261, %v454
    %v608 = vmax.f32 %v266, %v459
    %v609 = vmax.f32 %v271, %v464
    %v610 = vmax.f32 %v276, %v469
    %v611 = vmax.f32 %v281, %v474
    %v612 = vmax.f32 %v286, %v479
    %v613 = vmax.f32 %v291, %v484
    %v614 = vmax.f32 %v296, %v489
    %v615 = vmax.f32 %v301, %v494
    %v616 = vmax.f32 %v306, %v499
    %v617 = vmax.f32 %v311, %v504
    %v618 = vmax.f32 %v316, %v509
    %v619 = vmax.f32 %v321, %v514
    %v620 = vmax.f32 %v326, %v519
    %v621 = vmax.f32 %v331, %v524
    %v622 = vmax.f32 %v336, %v529
    %v623 = vmax.f32 %v341, %v534
    %v624 = vmax.f32 %v346, %v539
    %v625 = vmax.f32 %v351, %v544
    %v626 = vmax.f32 %v356, %v549
    %v627 = vmax.f32 %v361, %v554
    %v628 = vmax.f32 %v366, %v559
    %v629 = vmax.f32 %v371, %v564
    %v630 = vmax.f32 %v376, %v569
    %v631 = vmax.f32 %v381, %v574
    %v632 = vmax.f32 %v386, %v579
    %v633 = vmax.f32 %v391, %v584
    %v634 = vmax.f32 %v396, %v589
    %v635 = vmax.f32 %v401, %v594
    %v636 = vmax.f32 %v406, %v599
    %v637 = vmax.f32 %v411, %v604
    %v638 = vld [vmem:[%s4] sm:$0xff]
    %v639 = vld [vmem:[%s4 + $0x8] sm:$0xff]
    %v640 = vld [vmem:[%s4 + $0x10] sm:$0xff]
    %v641 = vld [vmem:[%s4 + $0x18] sm:$0xff]
    %v642 = vld [vmem:[%s4 + $0x20] sm:$0xff]
    %v643 = vld [vmem:[%s4 + $0x28] sm:$0xff]
    %v644 = vld [vmem:[%s4 + $0x30] sm:$0xff]
    %v645 = vld [vmem:[%s4 + $0x38] sm:$0xff]
    %v646 = vld [vmem:[%s4 + $0x40] sm:$0xff]
    %v647 = vld [vmem:[%s4 + $0x48] sm:$0xff]
    %v648 = vld [vmem:[%s4 + $0x50] sm:$0xff]
    %v649 = vld [vmem:[%s4 + $0x58] sm:$0xff]
    %v650 = vld [vmem:[%s4 + $0x60] sm:$0xff]
    %v651 = vld [vmem:[%s4 + $0x68] sm:$0xff]
    %v652 = vld [vmem:[%s4 + $0x70] sm:$0xff]
    %v653 = vld [vmem:[%s4 + $0x78] sm:$0xff]
    %v654 = vld [vmem:[%s4 + $0x80] sm:$0xff]
    %v655 = vld [vmem:[%s4 + $0x88] sm:$0xff]
    %v656 = vld [vmem:[%s4 + $0x90] sm:$0xff]
    %v657 = vld [vmem:[%s4 + $0x98] sm:$0xff]
    %v658 = vld [vmem:[%s4 + $0xa0] sm:$0xff]
    %v659 = vld [vmem:[%s4 + $0xa8] sm:$0xff]
    %v660 = vld [vmem:[%s4 + $0xb0] sm:$0xff]
    %v661 = vld [vmem:[%s4 + $0xb8] sm:$0xff]
    %v662 = vld [vmem:[%s4 + $0xc0] sm:$0xff]
    %v663 = vld [vmem:[%s4 + $0xc8] sm:$0xff]
    %v664 = vld [vmem:[%s4 + $0xd0] sm:$0xff]
    %v665 = vld [vmem:[%s4 + $0xd8] sm:$0xff]
    %v666 = vld [vmem:[%s4 + $0xe0] sm:$0xff]
    %v667 = vld [vmem:[%s4 + $0xe8] sm:$0xff]
    %v668 = vld [vmem:[%s4 + $0xf0] sm:$0xff]
    %v669 = vld [vmem:[%s4 + $0xf8] sm:$0xff]
    %671 = vset.pattern.permute.xlu0 0
    %672 = vperm.xlu0 %671, %v638
    %v673 = vpop.permute.xlu0 %672
    %676 = vset.pattern.permute.xlu0 0
    %677 = vperm.xlu0 %676, %v639
    %v678 = vpop.permute.xlu0 %677
    %681 = vset.pattern.permute.xlu0 0
    %682 = vperm.xlu0 %681, %v640
    %v683 = vpop.permute.xlu0 %682
    %686 = vset.pattern.permute.xlu0 0
    %687 = vperm.xlu0 %686, %v641
    %v688 = vpop.permute.xlu0 %687
    %691 = vset.pattern.permute.xlu0 0
    %692 = vperm.xlu0 %691, %v642
    %v693 = vpop.permute.xlu0 %692
    %696 = vset.pattern.permute.xlu0 0
    %697 = vperm.xlu0 %696, %v643
    %v698 = vpop.permute.xlu0 %697
    %701 = vset.pattern.permute.xlu0 0
    %702 = vperm.xlu0 %701, %v644
    %v703 = vpop.permute.xlu0 %702
    %706 = vset.pattern.permute.xlu0 0
    %707 = vperm.xlu0 %706, %v645
    %v708 = vpop.permute.xlu0 %707
    %711 = vset.pattern.permute.xlu0 0
    %712 = vperm.xlu0 %711, %v646
    %v713 = vpop.permute.xlu0 %712
    %716 = vset.pattern.permute.xlu0 0
    %717 = vperm.xlu0 %716, %v647
    %v718 = vpop.permute.xlu0 %717
    %721 = vset.pattern.permute.xlu0 0
    %722 = vperm.xlu0 %721, %v648
    %v723 = vpop.permute.xlu0 %722
    %726 = vset.pattern.permute.xlu0 0
    %727 = vperm.xlu0 %726, %v649
    %v728 = vpop.permute.xlu0 %727
    %731 = vset.pattern.permute.xlu0 0
    %732 = vperm.xlu0 %731, %v650
    %v733 = vpop.permute.xlu0 %732
    %736 = vset.pattern.permute.xlu0 0
    %737 = vperm.xlu0 %736, %v651
    %v738 = vpop.permute.xlu0 %737
    %741 = vset.pattern.permute.xlu0 0
    %742 = vperm.xlu0 %741, %v652
    %v743 = vpop.permute.xlu0 %742
    %746 = vset.pattern.permute.xlu0 0
    %747 = vperm.xlu0 %746, %v653
    %v748 = vpop.permute.xlu0 %747
    %751 = vset.pattern.permute.xlu0 0
    %752 = vperm.xlu0 %751, %v654
    %v753 = vpop.permute.xlu0 %752
    %756 = vset.pattern.permute.xlu0 0
    %757 = vperm.xlu0 %756, %v655
    %v758 = vpop.permute.xlu0 %757
    %761 = vset.pattern.permute.xlu0 0
    %762 = vperm.xlu0 %761, %v656
    %v763 = vpop.permute.xlu0 %762
    %766 = vset.pattern.permute.xlu0 0
    %767 = vperm.xlu0 %766, %v657
    %v768 = vpop.permute.xlu0 %767
    %771 = vset.pattern.permute.xlu0 0
    %772 = vperm.xlu0 %771, %v658
    %v773 = vpop.permute.xlu0 %772
    %776 = vset.pattern.permute.xlu0 0
    %777 = vperm.xlu0 %776, %v659
    %v778 = vpop.permute.xlu0 %777
    %781 = vset.pattern.permute.xlu0 0
    %782 = vperm.xlu0 %781, %v660
    %v783 = vpop.permute.xlu0 %782
    %786 = vset.pattern.permute.xlu0 0
    %787 = vperm.xlu0 %786, %v661
    %v788 = vpop.permute.xlu0 %787
    %791 = vset.pattern.permute.xlu0 0
    %792 = vperm.xlu0 %791, %v662
    %v793 = vpop.permute.xlu0 %792
    %796 = vset.pattern.permute.xlu0 0
    %797 = vperm.xlu0 %796, %v663
    %v798 = vpop.permute.xlu0 %797
    %801 = vset.pattern.permute.xlu0 0
    %802 = vperm.xlu0 %801, %v664
    %v803 = vpop.permute.xlu0 %802
    %806 = vset.pattern.permute.xlu0 0
    %807 = vperm.xlu0 %806, %v665
    %v808 = vpop.permute.xlu0 %807
    %811 = vset.pattern.permute.xlu0 0
    %812 = vperm.xlu0 %811, %v666
    %v813 = vpop.permute.xlu0 %812
    %816 = vset.pattern.permute.xlu0 0
    %817 = vperm.xlu0 %816, %v667
    %v818 = vpop.permute.xlu0 %817
    %821 = vset.pattern.permute.xlu0 0
    %822 = vperm.xlu0 %821, %v668
    %v823 = vpop.permute.xlu0 %822
    %826 = vset.pattern.permute.xlu0 0
    %827 = vperm.xlu0 %826, %v669
    %v828 = vpop.permute.xlu0 %827
    %v830 = vmul.f32 %v606, %v673
    %v831 = vmul.f32 %v607, %v678
    %v832 = vmul.f32 %v608, %v683
    %v833 = vmul.f32 %v609, %v688
    %v834 = vmul.f32 %v610, %v693
    %v835 = vmul.f32 %v611, %v698
    %v836 = vmul.f32 %v612, %v703
    %v837 = vmul.f32 %v613, %v708
    %v838 = vmul.f32 %v614, %v713
    %v839 = vmul.f32 %v615, %v718
    %v840 = vmul.f32 %v616, %v723
    %v841 = vmul.f32 %v617, %v728
    %v842 = vmul.f32 %v618, %v733
    %v843 = vmul.f32 %v619, %v738
    %v844 = vmul.f32 %v620, %v743
    %v845 = vmul.f32 %v621, %v748
    %v846 = vmul.f32 %v622, %v753
    %v847 = vmul.f32 %v623, %v758
    %v848 = vmul.f32 %v624, %v763
    %v849 = vmul.f32 %v625, %v768
    %v850 = vmul.f32 %v626, %v773
    %v851 = vmul.f32 %v627, %v778
    %v852 = vmul.f32 %v628, %v783
    %v853 = vmul.f32 %v629, %v788
    %v854 = vmul.f32 %v630, %v793
    %v855 = vmul.f32 %v631, %v798
    %v856 = vmul.f32 %v632, %v803
    %v857 = vmul.f32 %v633, %v808
    %v858 = vmul.f32 %v634, %v813
    %v859 = vmul.f32 %v635, %v818
    %v860 = vmul.f32 %v636, %v823
    %v861 = vmul.f32 %v637, %v828
    %v862 = vld [vmem:[%s5] sm:$0xff]
    %v863 = vld [vmem:[%s5 + $0x8] sm:$0xff]
    %v864 = vld [vmem:[%s5 + $0x10] sm:$0xff]
    %v865 = vld [vmem:[%s5 + $0x18] sm:$0xff]
    %v866 = vld [vmem:[%s5 + $0x20] sm:$0xff]
    %v867 = vld [vmem:[%s5 + $0x28] sm:$0xff]
    %v868 = vld [vmem:[%s5 + $0x30] sm:$0xff]
    %v869 = vld [vmem:[%s5 + $0x38] sm:$0xff]
    %v870 = vld [vmem:[%s5 + $0x40] sm:$0xff]
    %v871 = vld [vmem:[%s5 + $0x48] sm:$0xff]
    %v872 = vld [vmem:[%s5 + $0x50] sm:$0xff]
    %v873 = vld [vmem:[%s5 + $0x58] sm:$0xff]
    %v874 = vld [vmem:[%s5 + $0x60] sm:$0xff]
    %v875 = vld [vmem:[%s5 + $0x68] sm:$0xff]
    %v876 = vld [vmem:[%s5 + $0x70] sm:$0xff]
    %v877 = vld [vmem:[%s5 + $0x78] sm:$0xff]
    %v878 = vld [vmem:[%s5 + $0x80] sm:$0xff]
    %v879 = vld [vmem:[%s5 + $0x88] sm:$0xff]
    %v880 = vld [vmem:[%s5 + $0x90] sm:$0xff]
    %v881 = vld [vmem:[%s5 + $0x98] sm:$0xff]
    %v882 = vld [vmem:[%s5 + $0xa0] sm:$0xff]
    %v883 = vld [vmem:[%s5 + $0xa8] sm:$0xff]
    %v884 = vld [vmem:[%s5 + $0xb0] sm:$0xff]
    %v885 = vld [vmem:[%s5 + $0xb8] sm:$0xff]
    %v886 = vld [vmem:[%s5 + $0xc0] sm:$0xff]
    %v887 = vld [vmem:[%s5 + $0xc8] sm:$0xff]
    %v888 = vld [vmem:[%s5 + $0xd0] sm:$0xff]
    %v889 = vld [vmem:[%s5 + $0xd8] sm:$0xff]
    %v890 = vld [vmem:[%s5 + $0xe0] sm:$0xff]
    %v891 = vld [vmem:[%s5 + $0xe8] sm:$0xff]
    %v892 = vld [vmem:[%s5 + $0xf0] sm:$0xff]
    %v893 = vld [vmem:[%s5 + $0xf8] sm:$0xff]
    %895 = vset.pattern.permute.xlu0 0
    %896 = vperm.xlu0 %895, %v862
    %v897 = vpop.permute.xlu0 %896
    %900 = vset.pattern.permute.xlu0 0
    %901 = vperm.xlu0 %900, %v863
    %v902 = vpop.permute.xlu0 %901
    %905 = vset.pattern.permute.xlu0 0
    %906 = vperm.xlu0 %905, %v864
    %v907 = vpop.permute.xlu0 %906
    %910 = vset.pattern.permute.xlu0 0
    %911 = vperm.xlu0 %910, %v865
    %v912 = vpop.permute.xlu0 %911
    %915 = vset.pattern.permute.xlu0 0
    %916 = vperm.xlu0 %915, %v866
    %v917 = vpop.permute.xlu0 %916
    %920 = vset.pattern.permute.xlu0 0
    %921 = vperm.xlu0 %920, %v867
    %v922 = vpop.permute.xlu0 %921
    %925 = vset.pattern.permute.xlu0 0
    %926 = vperm.xlu0 %925, %v868
    %v927 = vpop.permute.xlu0 %926
    %930 = vset.pattern.permute.xlu0 0
    %931 = vperm.xlu0 %930, %v869
    %v932 = vpop.permute.xlu0 %931
    %935 = vset.pattern.permute.xlu0 0
    %936 = vperm.xlu0 %935, %v870
    %v937 = vpop.permute.xlu0 %936
    %940 = vset.pattern.permute.xlu0 0
    %941 = vperm.xlu0 %940, %v871
    %v942 = vpop.permute.xlu0 %941
    %945 = vset.pattern.permute.xlu0 0
    %946 = vperm.xlu0 %945, %v872
    %v947 = vpop.permute.xlu0 %946
    %950 = vset.pattern.permute.xlu0 0
    %951 = vperm.xlu0 %950, %v873
    %v952 = vpop.permute.xlu0 %951
    %955 = vset.pattern.permute.xlu0 0
    %956 = vperm.xlu0 %955, %v874
    %v957 = vpop.permute.xlu0 %956
    %960 = vset.pattern.permute.xlu0 0
    %961 = vperm.xlu0 %960, %v875
    %v962 = vpop.permute.xlu0 %961
    %965 = vset.pattern.permute.xlu0 0
    %966 = vperm.xlu0 %965, %v876
    %v967 = vpop.permute.xlu0 %966
    %970 = vset.pattern.permute.xlu0 0
    %971 = vperm.xlu0 %970, %v877
    %v972 = vpop.permute.xlu0 %971
    %975 = vset.pattern.permute.xlu0 0
    %976 = vperm.xlu0 %975, %v878
    %v977 = vpop.permute.xlu0 %976
    %980 = vset.pattern.permute.xlu0 0
    %981 = vperm.xlu0 %980, %v879
    %v982 = vpop.permute.xlu0 %981
    %985 = vset.pattern.permute.xlu0 0
    %986 = vperm.xlu0 %985, %v880
    %v987 = vpop.permute.xlu0 %986
    %990 = vset.pattern.permute.xlu0 0
    %991 = vperm.xlu0 %990, %v881
    %v992 = vpop.permute.xlu0 %991
    %995 = vset.pattern.permute.xlu0 0
    %996 = vperm.xlu0 %995, %v882
    %v997 = vpop.permute.xlu0 %996
    %1000 = vset.pattern.permute.xlu0 0
    %1001 = vperm.xlu0 %1000, %v883
    %v1002 = vpop.permute.xlu0 %1001
    %1005 = vset.pattern.permute.xlu0 0
    %1006 = vperm.xlu0 %1005, %v884
    %v1007 = vpop.permute.xlu0 %1006
    %1010 = vset.pattern.permute.xlu0 0
    %1011 = vperm.xlu0 %1010, %v885
    %v1012 = vpop.permute.xlu0 %1011
    %1015 = vset.pattern.permute.xlu0 0
    %1016 = vperm.xlu0 %1015, %v886
    %v1017 = vpop.permute.xlu0 %1016
    %1020 = vset.pattern.permute.xlu0 0
    %1021 = vperm.xlu0 %1020, %v887
    %v1022 = vpop.permute.xlu0 %1021
    %1025 = vset.pattern.permute.xlu0 0
    %1026 = vperm.xlu0 %1025, %v888
    %v1027 = vpop.permute.xlu0 %1026
    %1030 = vset.pattern.permute.xlu0 0
    %1031 = vperm.xlu0 %1030, %v889
    %v1032 = vpop.permute.xlu0 %1031
    %1035 = vset.pattern.permute.xlu0 0
    %1036 = vperm.xlu0 %1035, %v890
    %v1037 = vpop.permute.xlu0 %1036
    %1040 = vset.pattern.permute.xlu0 0
    %1041 = vperm.xlu0 %1040, %v891
    %v1042 = vpop.permute.xlu0 %1041
    %1045 = vset.pattern.permute.xlu0 0
    %1046 = vperm.xlu0 %1045, %v892
    %v1047 = vpop.permute.xlu0 %1046
    %1050 = vset.pattern.permute.xlu0 0
    %1051 = vperm.xlu0 %1050, %v893
    %v1052 = vpop.permute.xlu0 %1051
    %v1054 = vadd.f32 %v830, %v897
    %v1055 = vadd.f32 %v831, %v902
    %v1056 = vadd.f32 %v832, %v907
    %v1057 = vadd.f32 %v833, %v912
    %v1058 = vadd.f32 %v834, %v917
    %v1059 = vadd.f32 %v835, %v922
    %v1060 = vadd.f32 %v836, %v927
    %v1061 = vadd.f32 %v837, %v932
    %v1062 = vadd.f32 %v838, %v937
    %v1063 = vadd.f32 %v839, %v942
    %v1064 = vadd.f32 %v840, %v947
    %v1065 = vadd.f32 %v841, %v952
    %v1066 = vadd.f32 %v842, %v957
    %v1067 = vadd.f32 %v843, %v962
    %v1068 = vadd.f32 %v844, %v967
    %v1069 = vadd.f32 %v845, %v972
    %v1070 = vadd.f32 %v846, %v977
    %v1071 = vadd.f32 %v847, %v982
    %v1072 = vadd.f32 %v848, %v987
    %v1073 = vadd.f32 %v849, %v992
    %v1074 = vadd.f32 %v850, %v997
    %v1075 = vadd.f32 %v851, %v1002
    %v1076 = vadd.f32 %v852, %v1007
    %v1077 = vadd.f32 %v853, %v1012
    %v1078 = vadd.f32 %v854, %v1017
    %v1079 = vadd.f32 %v855, %v1022
    %v1080 = vadd.f32 %v856, %v1027
    %v1081 = vadd.f32 %v857, %v1032
    %v1082 = vadd.f32 %v858, %v1037
    %v1083 = vadd.f32 %v859, %v1042
    %v1084 = vadd.f32 %v860, %v1047
    %v1085 = vadd.f32 %v861, %v1052
    %v1086 = vmax.f32 %v1054, %v1070
    %v1087 = vmax.f32 %v1055, %v1071
    %v1088 = vmax.f32 %v1056, %v1072
    %v1089 = vmax.f32 %v1057, %v1073
    %v1090 = vmax.f32 %v1058, %v1074
    %v1091 = vmax.f32 %v1059, %v1075
    %v1092 = vmax.f32 %v1060, %v1076
    %v1093 = vmax.f32 %v1061, %v1077
    %v1094 = vmax.f32 %v1062, %v1078
    %v1095 = vmax.f32 %v1063, %v1079
    %v1096 = vmax.f32 %v1064, %v1080
    %v1097 = vmax.f32 %v1065, %v1081
    %v1098 = vmax.f32 %v1066, %v1082
    %v1099 = vmax.f32 %v1067, %v1083
    %v1100 = vmax.f32 %v1068, %v1084
    %v1101 = vmax.f32 %v1069, %v1085
    %v1102 = vpack.c.bf16 %v1087, %v1086
    %v1103 = vpack.c.bf16 %v1089, %v1088
    %v1104 = vpack.c.bf16 %v1091, %v1090
    %v1105 = vpack.c.bf16 %v1093, %v1092
    %v1106 = vpack.c.bf16 %v1095, %v1094
    %v1107 = vpack.c.bf16 %v1097, %v1096
    %v1108 = vpack.c.bf16 %v1099, %v1098
    %v1109 = vpack.c.bf16 %v1101, %v1100
    %v1110 = vld [vmem:[%s6] sm:$0xf]
    %v1111 = vld [vmem:[%s6 + $0x4] sm:$0xf]
    %v1112 = vld [vmem:[%s6 + $0x8] sm:$0xf]
    %v1113 = vld [vmem:[%s6 + $0xc] sm:$0xf]
    %v1114 = vld [vmem:[%s6 + $0x10] sm:$0xf]
    %v1115 = vld [vmem:[%s6 + $0x14] sm:$0xf]
    %v1116 = vld [vmem:[%s6 + $0x18] sm:$0xf]
    %v1117 = vld [vmem:[%s6 + $0x1c] sm:$0xf]
    %v1118 = vld [vmem:[%s6 + $0x20] sm:$0xf]
    %v1119 = vld [vmem:[%s6 + $0x24] sm:$0xf]
    %v1120 = vld [vmem:[%s6 + $0x28] sm:$0xf]
    %v1121 = vld [vmem:[%s6 + $0x2c] sm:$0xf]
    %v1122 = vld [vmem:[%s6 + $0x30] sm:$0xf]
    %v1123 = vld [vmem:[%s6 + $0x34] sm:$0xf]
    %v1124 = vld [vmem:[%s6 + $0x38] sm:$0xf]
    %v1125 = vld [vmem:[%s6 + $0x3c] sm:$0xf]
    %v1142 = vunpack.c.l.b16 %v1110
    %v1143 = vunpack.c.l.b16 %v1111
    %v1144 = vunpack.c.l.b16 %v1112
    %v1145 = vunpack.c.l.b16 %v1113
    %v1146 = vunpack.c.l.b16 %v1114
    %v1147 = vunpack.c.l.b16 %v1115
    %v1148 = vunpack.c.l.b16 %v1116
    %v1149 = vunpack.c.l.b16 %v1117
    %v1150 = vunpack.c.l.b16 %v1118
    %v1151 = vunpack.c.l.b16 %v1119
    %v1152 = vunpack.c.l.b16 %v1120
    %v1153 = vunpack.c.l.b16 %v1121
    %v1154 = vunpack.c.l.b16 %v1122
    %v1155 = vunpack.c.l.b16 %v1123
    %v1156 = vunpack.c.l.b16 %v1124
    %v1157 = vunpack.c.l.b16 %v1125
    %v1158 = vpack.c.b16 %v1143, %v1142
    %v1159 = vpack.c.b16 %v1145, %v1144
    %v1160 = vpack.c.b16 %v1147, %v1146
    %v1161 = vpack.c.b16 %v1149, %v1148
    %v1162 = vpack.c.b16 %v1151, %v1150
    %v1163 = vpack.c.b16 %v1153, %v1152
    %v1164 = vpack.c.b16 %v1155, %v1154
    %v1165 = vpack.c.b16 %v1157, %v1156
    %1174 = vmatprep.subr.bf16.mxu0 0
    %1175 = vmatpush1.bf16.msra.mxu0 %v1102
    %1176 = vmatprep.subr.bf16.mxu0 0
    %1177 = vmatpush1.bf16.msra.mxu0 %v1103
    %1178 = vmatprep.subr.bf16.mxu0 0
    %1179 = vmatpush1.bf16.msra.mxu0 %v1104
    %1180 = vmatprep.subr.bf16.mxu0 0
    %1181 = vmatpush1.bf16.msra.mxu0 %v1105
    %1182 = vmatprep.subr.bf16.mxu0 0
    %1183 = vmatpush1.bf16.msra.mxu0 %v1106
    %1184 = vmatprep.subr.bf16.mxu0 0
    %1185 = vmatpush1.bf16.msra.mxu0 %v1107
    %1186 = vmatprep.subr.bf16.mxu0 0
    %1187 = vmatpush1.bf16.msra.mxu0 %v1108
    %1188 = vmatprep.subr.bf16.mxu0 0
    %1189 = vmatpush1.bf16.msra.mxu0 %v1109
    %1190 = vmatprep.subr.bf16.mxu0 0
    %1191 = vmatpush1.bf16.msra.mxu0 0
    %1192 = vmatprep.subr.bf16.mxu0 0
    %1193 = vmatpush1.bf16.msra.mxu0 0
    %1194 = vmatprep.subr.bf16.mxu0 0
    %1195 = vmatpush1.bf16.msra.mxu0 0
    %1196 = vmatprep.subr.bf16.mxu0 0
    %1197 = vmatpush1.bf16.msra.mxu0 0
    %1198 = vmatprep.subr.bf16.mxu0 0
    %1199 = vmatpush1.bf16.msra.mxu0 0
    %1200 = vmatprep.subr.bf16.mxu0 0
    %1201 = vmatpush1.bf16.msra.mxu0 0
    %1202 = vmatprep.subr.bf16.mxu0 0
    %1203 = vmatpush1.bf16.msra.mxu0 0
    %1204 = vmatprep.subr.bf16.mxu0 0
    %1205 = vmatpush1.bf16.msra.mxu0 0
    %1206 = vmatprep.mubr.bf16.mxu0 0
    %1207 = vmatmul.mubr.bf16.gmra.mrb[0].mxu0 %v1158
    %v1208 = vpop.f32.mrb[0].mxu0
    %v1209 = vadd.f32 0.0, %v1208
    %v1210 = vpop.f32.mrb[0].mxu0
    %v1211 = vpop.f32.mrb[0].mxu0
    %v1212 = vadd.f32 0.0, %v1211
    %v1213 = vpop.f32.mrb[0].mxu0
    %1214 = vmatprep.mubr.bf16.mxu0 0
    %1215 = vmatmul.mubr.bf16.gmra.mrb[0].mxu0 %v1159
    %v1216 = vpop.f32.mrb[0].mxu0
    %v1217 = vadd.f32 0.0, %v1216
    %v1218 = vpop.f32.mrb[0].mxu0
    %v1219 = vpop.f32.mrb[0].mxu0
    %v1220 = vadd.f32 0.0, %v1219
    %v1221 = vpop.f32.mrb[0].mxu0
    %1222 = vmatprep.mubr.bf16.mxu0 0
    %1223 = vmatmul.mubr.bf16.gmra.mrb[0].mxu0 %v1160
    %v1224 = vpop.f32.mrb[0].mxu0
    %v1225 = vadd.f32 0.0, %v1224
    %v1226 = vpop.f32.mrb[0].mxu0
    %v1227 = vpop.f32.mrb[0].mxu0
    %v1228 = vadd.f32 0.0, %v1227
    %v1229 = vpop.f32.mrb[0].mxu0
    %1230 = vmatprep.mubr.bf16.mxu0 0
    %1231 = vmatmul.mubr.bf16.gmra.mrb[0].mxu0 %v1161
    %v1232 = vpop.f32.mrb[0].mxu0
    %v1233 = vadd.f32 0.0, %v1232
    %v1234 = vpop.f32.mrb[0].mxu0
    %v1235 = vpop.f32.mrb[0].mxu0
    %v1236 = vadd.f32 0.0, %v1235
    %v1237 = vpop.f32.mrb[0].mxu0
    %1238 = vmatprep.mubr.bf16.mxu0 0
    %1239 = vmatmul.mubr.bf16.gmra.mrb[0].mxu0 %v1162
    %v1240 = vpop.f32.mrb[0].mxu0
    %v1241 = vadd.f32 0.0, %v1240
    %v1242 = vpop.f32.mrb[0].mxu0
    %v1243 = vpop.f32.mrb[0].mxu0
    %v1244 = vadd.f32 0.0, %v1243
    %v1245 = vpop.f32.mrb[0].mxu0
    %1246 = vmatprep.mubr.bf16.mxu0 0
    %1247 = vmatmul.mubr.bf16.gmra.mrb[0].mxu0 %v1163
    %v1248 = vpop.f32.mrb[0].mxu0
    %v1249 = vadd.f32 0.0, %v1248
    %v1250 = vpop.f32.mrb[0].mxu0
    %v1251 = vpop.f32.mrb[0].mxu0
    %v1252 = vadd.f32 0.0, %v1251
    %v1253 = vpop.f32.mrb[0].mxu0
    %1254 = vmatprep.mubr.bf16.mxu0 0
    %1255 = vmatmul.mubr.bf16.gmra.mrb[0].mxu0 %v1164
    %v1256 = vpop.f32.mrb[0].mxu0
    %v1257 = vadd.f32 0.0, %v1256
    %v1258 = vpop.f32.mrb[0].mxu0
    %v1259 = vpop.f32.mrb[0].mxu0
    %v1260 = vadd.f32 0.0, %v1259
    %v1261 = vpop.f32.mrb[0].mxu0
    %1262 = vmatprep.mubr.bf16.mxu0 0
    %1263 = vmatmul.mubr.bf16.gmra.mrb[0].mxu0 %v1165
    %v1264 = vpop.f32.mrb[0].mxu0
    %v1265 = vadd.f32 0.0, %v1264
    %v1266 = vpop.f32.mrb[0].mxu0
    %v1267 = vpop.f32.mrb[0].mxu0
    %v1268 = vadd.f32 0.0, %v1267
    %v1269 = vpop.f32.mrb[0].mxu0
    %1270 = vdwg.mxu0
    %v1271 = vld [vmem:[%s7] sm:$0xff]
    %v1272 = vld [vmem:[%s7 + $0x8] sm:$0xff]
    %v1273 = vld [vmem:[%s7 + $0x10] sm:$0xff]
    %v1274 = vld [vmem:[%s7 + $0x18] sm:$0xff]
    %v1275 = vld [vmem:[%s7 + $0x20] sm:$0xff]
    %v1276 = vld [vmem:[%s7 + $0x28] sm:$0xff]
    %v1277 = vld [vmem:[%s7 + $0x30] sm:$0xff]
    %v1278 = vld [vmem:[%s7 + $0x38] sm:$0xff]
    %v1279 = vld [vmem:[%s7 + $0x40] sm:$0xff]
    %v1280 = vld [vmem:[%s7 + $0x48] sm:$0xff]
    %v1281 = vld [vmem:[%s7 + $0x50] sm:$0xff]
    %v1282 = vld [vmem:[%s7 + $0x58] sm:$0xff]
    %v1283 = vld [vmem:[%s7 + $0x60] sm:$0xff]
    %v1284 = vld [vmem:[%s7 + $0x68] sm:$0xff]
    %v1285 = vld [vmem:[%s7 + $0x70] sm:$0xff]
    %v1286 = vld [vmem:[%s7 + $0x78] sm:$0xff]
    %1288 = vset.pattern.permute.xlu0 0
    %1289 = vperm.xlu0 %1288, %v1271
    %v1290 = vpop.permute.xlu0 %1289
    %1293 = vset.pattern.permute.xlu0 0
    %1294 = vperm.xlu0 %1293, %v1272
    %v1295 = vpop.permute.xlu0 %1294
    %1298 = vset.pattern.permute.xlu0 0
    %1299 = vperm.xlu0 %1298, %v1273
    %v1300 = vpop.permute.xlu0 %1299
    %1303 = vset.pattern.permute.xlu0 0
    %1304 = vperm.xlu0 %1303, %v1274
    %v1305 = vpop.permute.xlu0 %1304
    %1308 = vset.pattern.permute.xlu0 0
    %1309 = vperm.xlu0 %1308, %v1275
    %v1310 = vpop.permute.xlu0 %1309
    %1313 = vset.pattern.permute.xlu0 0
    %1314 = vperm.xlu0 %1313, %v1276
    %v1315 = vpop.permute.xlu0 %1314
    %1318 = vset.pattern.permute.xlu0 0
    %1319 = vperm.xlu0 %1318, %v1277
    %v1320 = vpop.permute.xlu0 %1319
    %1323 = vset.pattern.permute.xlu0 0
    %1324 = vperm.xlu0 %1323, %v1278
    %v1325 = vpop.permute.xlu0 %1324
    %1328 = vset.pattern.permute.xlu0 0
    %1329 = vperm.xlu0 %1328, %v1279
    %v1330 = vpop.permute.xlu0 %1329
    %1333 = vset.pattern.permute.xlu0 0
    %1334 = vperm.xlu0 %1333, %v1280
    %v1335 = vpop.permute.xlu0 %1334
    %1338 = vset.pattern.permute.xlu0 0
    %1339 = vperm.xlu0 %1338, %v1281
    %v1340 = vpop.permute.xlu0 %1339
    %1343 = vset.pattern.permute.xlu0 0
    %1344 = vperm.xlu0 %1343, %v1282
    %v1345 = vpop.permute.xlu0 %1344
    %1348 = vset.pattern.permute.xlu0 0
    %1349 = vperm.xlu0 %1348, %v1283
    %v1350 = vpop.permute.xlu0 %1349
    %1353 = vset.pattern.permute.xlu0 0
    %1354 = vperm.xlu0 %1353, %v1284
    %v1355 = vpop.permute.xlu0 %1354
    %1358 = vset.pattern.permute.xlu0 0
    %1359 = vperm.xlu0 %1358, %v1285
    %v1360 = vpop.permute.xlu0 %1359
    %1363 = vset.pattern.permute.xlu0 0
    %1364 = vperm.xlu0 %1363, %v1286
    %v1365 = vpop.permute.xlu0 %1364
    %v1367 = vmax.f32 %v1209, %v1290
    %v1368 = vmax.f32 %v1212, %v1295
    %v1369 = vmax.f32 %v1217, %v1300
    %v1370 = vmax.f32 %v1220, %v1305
    %v1371 = vmax.f32 %v1225, %v1310
    %v1372 = vmax.f32 %v1228, %v1315
    %v1373 = vmax.f32 %v1233, %v1320
    %v1374 = vmax.f32 %v1236, %v1325
    %v1375 = vmax.f32 %v1241, %v1330
    %v1376 = vmax.f32 %v1244, %v1335
    %v1377 = vmax.f32 %v1249, %v1340
    %v1378 = vmax.f32 %v1252, %v1345
    %v1379 = vmax.f32 %v1257, %v1350
    %v1380 = vmax.f32 %v1260, %v1355
    %v1381 = vmax.f32 %v1265, %v1360
    %v1382 = vmax.f32 %v1268, %v1365
    %v1383 = vld [vmem:[%s8] sm:$0xff]
    %v1384 = vld [vmem:[%s8 + $0x8] sm:$0xff]
    %v1385 = vld [vmem:[%s8 + $0x10] sm:$0xff]
    %v1386 = vld [vmem:[%s8 + $0x18] sm:$0xff]
    %v1387 = vld [vmem:[%s8 + $0x20] sm:$0xff]
    %v1388 = vld [vmem:[%s8 + $0x28] sm:$0xff]
    %v1389 = vld [vmem:[%s8 + $0x30] sm:$0xff]
    %v1390 = vld [vmem:[%s8 + $0x38] sm:$0xff]
    %v1391 = vld [vmem:[%s8 + $0x40] sm:$0xff]
    %v1392 = vld [vmem:[%s8 + $0x48] sm:$0xff]
    %v1393 = vld [vmem:[%s8 + $0x50] sm:$0xff]
    %v1394 = vld [vmem:[%s8 + $0x58] sm:$0xff]
    %v1395 = vld [vmem:[%s8 + $0x60] sm:$0xff]
    %v1396 = vld [vmem:[%s8 + $0x68] sm:$0xff]
    %v1397 = vld [vmem:[%s8 + $0x70] sm:$0xff]
    %v1398 = vld [vmem:[%s8 + $0x78] sm:$0xff]
    %1400 = vset.pattern.permute.xlu0 0
    %1401 = vperm.xlu0 %1400, %v1383
    %v1402 = vpop.permute.xlu0 %1401
    %1405 = vset.pattern.permute.xlu0 0
    %1406 = vperm.xlu0 %1405, %v1384
    %v1407 = vpop.permute.xlu0 %1406
    %1410 = vset.pattern.permute.xlu0 0
    %1411 = vperm.xlu0 %1410, %v1385
    %v1412 = vpop.permute.xlu0 %1411
    %1415 = vset.pattern.permute.xlu0 0
    %1416 = vperm.xlu0 %1415, %v1386
    %v1417 = vpop.permute.xlu0 %1416
    %1420 = vset.pattern.permute.xlu0 0
    %1421 = vperm.xlu0 %1420, %v1387
    %v1422 = vpop.permute.xlu0 %1421
    %1425 = vset.pattern.permute.xlu0 0
    %1426 = vperm.xlu0 %1425, %v1388
    %v1427 = vpop.permute.xlu0 %1426
    %1430 = vset.pattern.permute.xlu0 0
    %1431 = vperm.xlu0 %1430, %v1389
    %v1432 = vpop.permute.xlu0 %1431
    %1435 = vset.pattern.permute.xlu0 0
    %1436 = vperm.xlu0 %1435, %v1390
    %v1437 = vpop.permute.xlu0 %1436
    %1440 = vset.pattern.permute.xlu0 0
    %1441 = vperm.xlu0 %1440, %v1391
    %v1442 = vpop.permute.xlu0 %1441
    %1445 = vset.pattern.permute.xlu0 0
    %1446 = vperm.xlu0 %1445, %v1392
    %v1447 = vpop.permute.xlu0 %1446
    %1450 = vset.pattern.permute.xlu0 0
    %1451 = vperm.xlu0 %1450, %v1393
    %v1452 = vpop.permute.xlu0 %1451
    %1455 = vset.pattern.permute.xlu0 0
    %1456 = vperm.xlu0 %1455, %v1394
    %v1457 = vpop.permute.xlu0 %1456
    %1460 = vset.pattern.permute.xlu0 0
    %1461 = vperm.xlu0 %1460, %v1395
    %v1462 = vpop.permute.xlu0 %1461
    %1465 = vset.pattern.permute.xlu0 0
    %1466 = vperm.xlu0 %1465, %v1396
    %v1467 = vpop.permute.xlu0 %1466
    %1470 = vset.pattern.permute.xlu0 0
    %1471 = vperm.xlu0 %1470, %v1397
    %v1472 = vpop.permute.xlu0 %1471
    %1475 = vset.pattern.permute.xlu0 0
    %1476 = vperm.xlu0 %1475, %v1398
    %v1477 = vpop.permute.xlu0 %1476
    %v1479 = vmul.f32 %v1367, %v1402
    %v1480 = vmul.f32 %v1368, %v1407
    %v1481 = vmul.f32 %v1369, %v1412
    %v1482 = vmul.f32 %v1370, %v1417
    %v1483 = vmul.f32 %v1371, %v1422
    %v1484 = vmul.f32 %v1372, %v1427
    %v1485 = vmul.f32 %v1373, %v1432
    %v1486 = vmul.f32 %v1374, %v1437
    %v1487 = vmul.f32 %v1375, %v1442
    %v1488 = vmul.f32 %v1376, %v1447
    %v1489 = vmul.f32 %v1377, %v1452
    %v1490 = vmul.f32 %v1378, %v1457
    %v1491 = vmul.f32 %v1379, %v1462
    %v1492 = vmul.f32 %v1380, %v1467
    %v1493 = vmul.f32 %v1381, %v1472
    %v1494 = vmul.f32 %v1382, %v1477
    %v1495 = vld [vmem:[%s9] sm:$0xff]
    %v1496 = vld [vmem:[%s9 + $0x8] sm:$0xff]
    %v1497 = vld [vmem:[%s9 + $0x10] sm:$0xff]
    %v1498 = vld [vmem:[%s9 + $0x18] sm:$0xff]
    %v1499 = vld [vmem:[%s9 + $0x20] sm:$0xff]
    %v1500 = vld [vmem:[%s9 + $0x28] sm:$0xff]
    %v1501 = vld [vmem:[%s9 + $0x30] sm:$0xff]
    %v1502 = vld [vmem:[%s9 + $0x38] sm:$0xff]
    %v1503 = vld [vmem:[%s9 + $0x40] sm:$0xff]
    %v1504 = vld [vmem:[%s9 + $0x48] sm:$0xff]
    %v1505 = vld [vmem:[%s9 + $0x50] sm:$0xff]
    %v1506 = vld [vmem:[%s9 + $0x58] sm:$0xff]
    %v1507 = vld [vmem:[%s9 + $0x60] sm:$0xff]
    %v1508 = vld [vmem:[%s9 + $0x68] sm:$0xff]
    %v1509 = vld [vmem:[%s9 + $0x70] sm:$0xff]
    %v1510 = vld [vmem:[%s9 + $0x78] sm:$0xff]
    %1512 = vset.pattern.permute.xlu0 0
    %1513 = vperm.xlu0 %1512, %v1495
    %v1514 = vpop.permute.xlu0 %1513
    %1517 = vset.pattern.permute.xlu0 0
    %1518 = vperm.xlu0 %1517, %v1496
    %v1519 = vpop.permute.xlu0 %1518
    %1522 = vset.pattern.permute.xlu0 0
    %1523 = vperm.xlu0 %1522, %v1497
    %v1524 = vpop.permute.xlu0 %1523
    %1527 = vset.pattern.permute.xlu0 0
    %1528 = vperm.xlu0 %1527, %v1498
    %v1529 = vpop.permute.xlu0 %1528
    %1532 = vset.pattern.permute.xlu0 0
    %1533 = vperm.xlu0 %1532, %v1499
    %v1534 = vpop.permute.xlu0 %1533
    %1537 = vset.pattern.permute.xlu0 0
    %1538 = vperm.xlu0 %1537, %v1500
    %v1539 = vpop.permute.xlu0 %1538
    %1542 = vset.pattern.permute.xlu0 0
    %1543 = vperm.xlu0 %1542, %v1501
    %v1544 = vpop.permute.xlu0 %1543
    %1547 = vset.pattern.permute.xlu0 0
    %1548 = vperm.xlu0 %1547, %v1502
    %v1549 = vpop.permute.xlu0 %1548
    %1552 = vset.pattern.permute.xlu0 0
    %1553 = vperm.xlu0 %1552, %v1503
    %v1554 = vpop.permute.xlu0 %1553
    %1557 = vset.pattern.permute.xlu0 0
    %1558 = vperm.xlu0 %1557, %v1504
    %v1559 = vpop.permute.xlu0 %1558
    %1562 = vset.pattern.permute.xlu0 0
    %1563 = vperm.xlu0 %1562, %v1505
    %v1564 = vpop.permute.xlu0 %1563
    %1567 = vset.pattern.permute.xlu0 0
    %1568 = vperm.xlu0 %1567, %v1506
    %v1569 = vpop.permute.xlu0 %1568
    %1572 = vset.pattern.permute.xlu0 0
    %1573 = vperm.xlu0 %1572, %v1507
    %v1574 = vpop.permute.xlu0 %1573
    %1577 = vset.pattern.permute.xlu0 0
    %1578 = vperm.xlu0 %1577, %v1508
    %v1579 = vpop.permute.xlu0 %1578
    %1582 = vset.pattern.permute.xlu0 0
    %1583 = vperm.xlu0 %1582, %v1509
    %v1584 = vpop.permute.xlu0 %1583
    %1587 = vset.pattern.permute.xlu0 0
    %1588 = vperm.xlu0 %1587, %v1510
    %v1589 = vpop.permute.xlu0 %1588
    %v1591 = vadd.f32 %v1479, %v1514
    %v1592 = vadd.f32 %v1480, %v1519
    %v1593 = vadd.f32 %v1481, %v1524
    %v1594 = vadd.f32 %v1482, %v1529
    %v1595 = vadd.f32 %v1483, %v1534
    %v1596 = vadd.f32 %v1484, %v1539
    %v1597 = vadd.f32 %v1485, %v1544
    %v1598 = vadd.f32 %v1486, %v1549
    %v1599 = vadd.f32 %v1487, %v1554
    %v1600 = vadd.f32 %v1488, %v1559
    %v1601 = vadd.f32 %v1489, %v1564
    %v1602 = vadd.f32 %v1490, %v1569
    %v1603 = vadd.f32 %v1491, %v1574
    %v1604 = vadd.f32 %v1492, %v1579
    %v1605 = vadd.f32 %v1493, %v1584
    %v1606 = vadd.f32 %v1494, %v1589
    %v1607 = vmax.f32 %v1591, %v1599
    %v1608 = vmax.f32 %v1592, %v1600
    %v1609 = vmax.f32 %v1593, %v1601
    %v1610 = vmax.f32 %v1594, %v1602
    %v1611 = vmax.f32 %v1595, %v1603
    %v1612 = vmax.f32 %v1596, %v1604
    %v1613 = vmax.f32 %v1597, %v1605
    %v1614 = vmax.f32 %v1598, %v1606
    %v1615 = vpack.c.bf16 %v1608, %v1607
    %v1616 = vpack.c.bf16 %v1610, %v1609
    %v1617 = vpack.c.bf16 %v1612, %v1611
    %v1618 = vpack.c.bf16 %v1614, %v1613
    %v1619 = vld [vmem:[%s10] sm:$0xf]
    %v1620 = vld [vmem:[%s10 + $0x4] sm:$0xf]
    %v1621 = vld [vmem:[%s10 + $0x8] sm:$0xf]
    %v1622 = vld [vmem:[%s10 + $0xc] sm:$0xf]
    %v1627 = vunpack.c.l.b16 %v1619
    %v1628 = vunpack.c.l.b16 %v1620
    %v1629 = vunpack.c.l.b16 %v1621
    %v1630 = vunpack.c.l.b16 %v1622
    %v1631 = vpack.c.b16 %v1628, %v1627
    %v1632 = vpack.c.b16 %v1630, %v1629
    %vm1633 = vcmask 523264
    %v1635 = vsel %vm1633, %v1631, 0
    %v1638 = vsel %vm1633, %v1632, 0
    %1640 = vmatprep.subr.bf16.mxu0 0
    %1641 = vmatpush1.bf16.msra.mxu0 %v1615
    %1642 = vmatprep.subr.bf16.mxu0 0
    %1643 = vmatpush1.bf16.msra.mxu0 %v1616
    %1644 = vmatprep.subr.bf16.mxu0 0
    %1645 = vmatpush1.bf16.msra.mxu0 %v1617
    %1646 = vmatprep.subr.bf16.mxu0 0
    %1647 = vmatpush1.bf16.msra.mxu0 %v1618
    %1648 = vmatprep.subr.bf16.mxu0 0
    %1649 = vmatpush1.bf16.msra.mxu0 0
    %1650 = vmatprep.subr.bf16.mxu0 0
    %1651 = vmatpush1.bf16.msra.mxu0 0
    %1652 = vmatprep.subr.bf16.mxu0 0
    %1653 = vmatpush1.bf16.msra.mxu0 0
    %1654 = vmatprep.subr.bf16.mxu0 0
    %1655 = vmatpush1.bf16.msra.mxu0 0
    %1656 = vmatprep.subr.bf16.mxu0 0
    %1657 = vmatpush1.bf16.msra.mxu0 0
    %1658 = vmatprep.subr.bf16.mxu0 0
    %1659 = vmatpush1.bf16.msra.mxu0 0
    %1660 = vmatprep.subr.bf16.mxu0 0
    %1661 = vmatpush1.bf16.msra.mxu0 0
    %1662 = vmatprep.subr.bf16.mxu0 0
    %1663 = vmatpush1.bf16.msra.mxu0 0
    %1664 = vmatprep.subr.bf16.mxu0 0
    %1665 = vmatpush1.bf16.msra.mxu0 0
    %1666 = vmatprep.subr.bf16.mxu0 0
    %1667 = vmatpush1.bf16.msra.mxu0 0
    %1668 = vmatprep.subr.bf16.mxu0 0
    %1669 = vmatpush1.bf16.msra.mxu0 0
    %1670 = vmatprep.subr.bf16.mxu0 0
    %1671 = vmatpush1.bf16.msra.mxu0 0
    %1672 = vmatprep.mubr.bf16.mxu0 0
    %1673 = vmatmul.mubr.bf16.gmra.mrb[0].mxu0 %v1635
    %v1674 = vpop.f32.mrb[0].mxu0
    %v1675 = vadd.f32 0.0, %v1674
    %v1676 = vpop.f32.mrb[0].mxu0
    %v1677 = vpop.f32.mrb[0].mxu0
    %v1678 = vadd.f32 0.0, %v1677
    %v1679 = vpop.f32.mrb[0].mxu0
    %1680 = vmatprep.mubr.bf16.mxu0 0
    %1681 = vmatmul.mubr.bf16.gmra.mrb[0].mxu0 %v1638
    %v1682 = vpop.f32.mrb[0].mxu0
    %v1683 = vadd.f32 0.0, %v1682
    %v1684 = vpop.f32.mrb[0].mxu0
    %v1685 = vpop.f32.mrb[0].mxu0
    %v1686 = vadd.f32 0.0, %v1685
    %v1687 = vpop.f32.mrb[0].mxu0
    %1688 = vdwg.mxu0
    %v1689 = vld [vmem:[%s11] sm:$0xff]
    %v1690 = vld [vmem:[%s11 + $0x8] sm:$0xff]
    %v1691 = vld [vmem:[%s11 + $0x10] sm:$0xff]
    %v1692 = vld [vmem:[%s11 + $0x18] sm:$0xff]
    %1694 = vset.pattern.permute.xlu0 0
    %1695 = vperm.xlu0 %1694, %v1689
    %v1696 = vpop.permute.xlu0 %1695
    %1699 = vset.pattern.permute.xlu0 0
    %1700 = vperm.xlu0 %1699, %v1690
    %v1701 = vpop.permute.xlu0 %1700
    %1704 = vset.pattern.permute.xlu0 0
    %1705 = vperm.xlu0 %1704, %v1691
    %v1706 = vpop.permute.xlu0 %1705
    %1709 = vset.pattern.permute.xlu0 0
    %1710 = vperm.xlu0 %1709, %v1692
    %v1711 = vpop.permute.xlu0 %1710
    %v1713 = vmax.f32 %v1675, %v1696
    %v1714 = vmax.f32 %v1678, %v1701
    %v1715 = vmax.f32 %v1683, %v1706
    %v1716 = vmax.f32 %v1686, %v1711
    %v1717 = vld [vmem:[%s12] sm:$0xff]
    %v1718 = vld [vmem:[%s12 + $0x8] sm:$0xff]
    %v1719 = vld [vmem:[%s12 + $0x10] sm:$0xff]
    %v1720 = vld [vmem:[%s12 + $0x18] sm:$0xff]
    %1722 = vset.pattern.permute.xlu0 0
    %1723 = vperm.xlu0 %1722, %v1717
    %v1724 = vpop.permute.xlu0 %1723
    %1727 = vset.pattern.permute.xlu0 0
    %1728 = vperm.xlu0 %1727, %v1718
    %v1729 = vpop.permute.xlu0 %1728
    %1732 = vset.pattern.permute.xlu0 0
    %1733 = vperm.xlu0 %1732, %v1719
    %v1734 = vpop.permute.xlu0 %1733
    %1737 = vset.pattern.permute.xlu0 0
    %1738 = vperm.xlu0 %1737, %v1720
    %v1739 = vpop.permute.xlu0 %1738
    %v1741 = vmul.f32 %v1713, %v1724
    %v1742 = vmul.f32 %v1714, %v1729
    %v1743 = vmul.f32 %v1715, %v1734
    %v1744 = vmul.f32 %v1716, %v1739
    %v1745 = vld [vmem:[%s13] sm:$0xff]
    %v1746 = vld [vmem:[%s13 + $0x8] sm:$0xff]
    %v1747 = vld [vmem:[%s13 + $0x10] sm:$0xff]
    %v1748 = vld [vmem:[%s13 + $0x18] sm:$0xff]
    %1750 = vset.pattern.permute.xlu0 0
    %1751 = vperm.xlu0 %1750, %v1745
    %v1752 = vpop.permute.xlu0 %1751
    %1755 = vset.pattern.permute.xlu0 0
    %1756 = vperm.xlu0 %1755, %v1746
    %v1757 = vpop.permute.xlu0 %1756
    %1760 = vset.pattern.permute.xlu0 0
    %1761 = vperm.xlu0 %1760, %v1747
    %v1762 = vpop.permute.xlu0 %1761
    %1765 = vset.pattern.permute.xlu0 0
    %1766 = vperm.xlu0 %1765, %v1748
    %v1767 = vpop.permute.xlu0 %1766
    %v1769 = vadd.f32 %v1741, %v1752
    %v1770 = vadd.f32 %v1742, %v1757
    %v1771 = vadd.f32 %v1743, %v1762
    %v1772 = vadd.f32 %v1744, %v1767
    %v1773 = vpack.c.bf16 %v1770, %v1769
    %v1774 = vpack.c.bf16 %v1772, %v1771
    %v1775 = vld [vmem:[%s14] sm:$0x7]
    %v1776 = vld [vmem:[%s15] sm:$0x1f]
    %v1777 = vld [vmem:[%s1] sm:$0x1]
    %1779 = vset.pattern.permute.xlu0 0
    %1780 = vperm.xlu0 %1779, %v1776
    %v1781 = vpop.permute.xlu0 %1780
    %v1784 = vlaneseq
    %v1785 = vshrl.u32 %v1784, 7
    %v1786 = vsub.s32 0, %v1785
    %v1787 = vrot.slane %v1777, %v1786
    %v1789 = vmul.f32 %v1781, %v1787
    %vm1790 = vcmask 261120
    %v1792 = vsel %vm1790, %v1775, 0
    %1794 = vmatprep.subr.bf16.mxu0 0
    %1795 = vmatpush1.bf16.msra.mxu0 %v1773
    %1796 = vmatprep.subr.bf16.mxu0 0
    %1797 = vmatpush1.bf16.msra.mxu0 %v1774
    %1798 = vmatprep.subr.bf16.mxu0 0
    %1799 = vmatpush1.bf16.msra.mxu0 0
    %1800 = vmatprep.subr.bf16.mxu0 0
    %1801 = vmatpush1.bf16.msra.mxu0 0
    %1802 = vmatprep.subr.bf16.mxu0 0
    %1803 = vmatpush1.bf16.msra.mxu0 0
    %1804 = vmatprep.subr.bf16.mxu0 0
    %1805 = vmatpush1.bf16.msra.mxu0 0
    %1806 = vmatprep.subr.bf16.mxu0 0
    %1807 = vmatpush1.bf16.msra.mxu0 0
    %1808 = vmatprep.subr.bf16.mxu0 0
    %1809 = vmatpush1.bf16.msra.mxu0 0
    %1810 = vmatprep.subr.bf16.mxu0 0
    %1811 = vmatpush1.bf16.msra.mxu0 0
    %1812 = vmatprep.subr.bf16.mxu0 0
    %1813 = vmatpush1.bf16.msra.mxu0 0
    %1814 = vmatprep.subr.bf16.mxu0 0
    %1815 = vmatpush1.bf16.msra.mxu0 0
    %1816 = vmatprep.subr.bf16.mxu0 0
    %1817 = vmatpush1.bf16.msra.mxu0 0
    %1818 = vmatprep.subr.bf16.mxu0 0
    %1819 = vmatpush1.bf16.msra.mxu0 0
    %1820 = vmatprep.subr.bf16.mxu0 0
    %1821 = vmatpush1.bf16.msra.mxu0 0
    %1822 = vmatprep.subr.bf16.mxu0 0
    %1823 = vmatpush1.bf16.msra.mxu0 0
    %1824 = vmatprep.subr.bf16.mxu0 0
    %1825 = vmatpush1.bf16.msra.mxu0 0
    %1826 = vmatprep.mubr.bf16.mxu0 0
    %1827 = vmatmul.mubr.bf16.gmra.mrb[0].mxu0 %v1792
    %v1828 = vpop.f32.mrb[0].mxu0
    %v1829 = vadd.f32 %v1789, %v1828
    %v1830 = vpop.f32.mrb[0].mxu0
    %v1831 = vpop.f32.mrb[0].mxu0
    %v1832 = vpop.f32.mrb[0].mxu0
    %1833 = vdwg.mxu0
    %v1834 = vld [vmem:[%s16] sm:$0x1f]
    %1836 = vset.pattern.permute.xlu0 0
    %1837 = vperm.xlu0 %1836, %v1834
    %v1838 = vpop.permute.xlu0 %1837
    %v1840 = vadd.f32 %v1829, %v1838
    %1841 = vst [vmem:[#allocation2] sm:$0x1f] %v1840
    // Predicated region
    $region70: #{tpu_custom_call.1} parent=1 // pred_check
      _
    $region71: #{tpu_custom_call.1} parent=1 // pred_check_branch
      %1843 = sbr.rel (0) target = $region73
    $region72: #{tpu_custom_call.1} parent=1 // pred_region
      %s1845 = ssub.s32 128, 128
      %1846 = vsyncadd [#allocation3], %s1845
      %s1848 = sshll.u32 [#allocation2], 4
      %s1849 = int_to_ptr.vmem [resolvable:$true] %s1848
      %1851 = dma.vmem_to_hbm [thread:$0]  %s1849, 128, %s17, [#allocation3]
    $region73: #{tpu_custom_call.1} parent=1 // pred_fallthru
      _
    // Predicated region
    $region74: #{tpu_custom_call.1} parent=1 // pred_check
      _
    $region75: #{tpu_custom_call.1} parent=1 // pred_check_branch
      %1853 = sbr.rel (0) target = $region77
    $region76: #{tpu_custom_call.1} parent=1 // pred_region
      %1854 = dma.done [#allocation3], 128
    $region77: #{tpu_custom_call.1} parent=1 // pred_fallthru
      _
    %1855 = vsyncpa [#allocation3], 1

</llo_original>
